<compile_context>
chip_gen: v7x
topology: tpu7x:2x2x1
jax: 0.10.0
libtpu: 0.0.40
codegen_flags: <defaults>
</compile_context>

<pallas_src>
import functools

import jax
import jax.numpy as jnp
from jax.experimental import pallas as pl
from jax.experimental.pallas import tpu as pltpu

HIDDEN = 32
DIM = 3
TILE_N = 128  # lane-dense batch tile (multiple of 128 lanes)


def _ode_rk4_kernel(y0_ref, w1t_ref, b1_ref, w2t_ref, b2_ref, y_out_ref,
                    *, dt, num_t):
    """One invocation per batch tile; full RK4 time loop unrolled inside.

    Lane-dense layout (batch in the last / 128-lane axis):
      y0_ref    : (DIM, tile_n)
      w1t_ref   : (HIDDEN, DIM)        -- W1 transposed, (out, in)
      b1_ref    : (HIDDEN, 1)
      w2t_ref   : (DIM, HIDDEN)        -- W2 transposed
      b2_ref    : (DIM, 1)
      y_out_ref : (num_t * DIM, tile_n) -- flattened time-major output slab
    """
    tile_n = y0_ref.shape[1]

    # Hoist parameter loads and bias broadcasts out of the unrolled loop
    # (JAX does not CSE broadcast_in_dim; these would otherwise be re-emitted
    # 16 times on the serial RK4 dependency chain).
    w1t = w1t_ref[...]                                       # (HIDDEN, DIM)
    w2t = w2t_ref[...]                                       # (DIM, HIDDEN)
    b1_b = jnp.broadcast_to(b1_ref[...], (HIDDEN, tile_n))   # (HIDDEN, tile_n)
    b2_b = jnp.broadcast_to(b2_ref[...], (DIM, tile_n))      # (DIM, tile_n)

    def f(y):  # y: (DIM, tile_n)
        # Layer 1 on the MXU (K=3): one push, no per-f sublane broadcasts.
        h = jnp.tanh(
            jnp.dot(w1t, y, preferred_element_type=jnp.float32) + b1_b)
        # Layer 2 on the MXU (K=32).
        return jnp.dot(w2t, h, preferred_element_type=jnp.float32) + b2_b

    third = 1.0 / 3.0
    c_third = dt * third
    c_eighth = dt * 0.125

    y = y0_ref[...]
    y_out_ref[0:DIM, :] = y
    for i in range(1, num_t):  # static unroll; num_t is tiny (5)
        k1 = f(y)
        k2 = f(y + c_third * k1)
        k3 = f(y + dt * (k2 - third * k1))
        k4 = f(y + dt * (k1 - k2 + k3))
        y = y + c_eighth * (k1 + 3.0 * (k2 + k3) + k4)
        y_out_ref[i * DIM:(i + 1) * DIM, :] = y


def net1_forward(x, params, *, t_f=0.05, dt=0.01):
    """Pallas implementation of Net1.forward. Returns (t_seq, y) with
    y of shape (T, N, 3), matching torchdiffeq's odeint output."""
    w1, b1, w2, b2 = params  # w1:(DIM,HIDDEN) b1:(HIDDEN,) w2:(HIDDEN,DIM) b2:(DIM,)
    y0 = x.reshape(-1, DIM).astype(jnp.float32)
    n = y0.shape[0]

    # t_seq = torch.arange(0.0, t_f, dt)  (matches PyTorch arange semantics;
    # NOTE: float-step arange endpoint count is fragile if t_f/dt change, but
    # num_t is derived consistently from it here).
    t_seq = jnp.arange(0.0, t_f, dt, dtype=jnp.float32)
    num_t = int(t_seq.shape[0])

    # Lane-dense: batch in the last axis, padded to a multiple of 128 lanes.
    # For N <= TILE_N this stays a single grid step (overhead-bound regime);
    # larger batches get more lane tiles sharded "parallel" across cores.
    n_pad = ((n + TILE_N - 1) // TILE_N) * TILE_N
    y0_t = jnp.zeros((DIM, n_pad), jnp.float32).at[:, :n].set(y0.T)

    w1t = w1.T.astype(jnp.float32)                      # (HIDDEN, DIM)
    b1c = b1.reshape(HIDDEN, 1).astype(jnp.float32)     # (HIDDEN, 1)
    w2t = w2.T.astype(jnp.float32)                      # (DIM, HIDDEN)
    b2c = b2.reshape(DIM, 1).astype(jnp.float32)        # (DIM, 1)

    kernel = functools.partial(_ode_rk4_kernel, dt=float(dt), num_t=num_t)
    num_tiles = n_pad // TILE_N
    out_rows = num_t * DIM  # flattened (T*DIM, n_pad) output slab

    y_pad = pl.pallas_call(
        kernel,
        out_shape=jax.ShapeDtypeStruct((out_rows, n_pad), jnp.float32),
        grid=(num_tiles,),
        in_specs=[
            pl.BlockSpec((DIM, TILE_N), lambda i: (0, i)),      # y0 (lane tile)
            pl.BlockSpec((HIDDEN, DIM), lambda i: (0, 0)),      # W1^T
            pl.BlockSpec((HIDDEN, 1), lambda i: (0, 0)),        # b1
            pl.BlockSpec((DIM, HIDDEN), lambda i: (0, 0)),      # W2^T
            pl.BlockSpec((DIM, 1), lambda i: (0, 0)),           # b2
        ],
        out_specs=pl.BlockSpec((out_rows, TILE_N), lambda i: (0, i)),
        compiler_params=pltpu.CompilerParams(
            dimension_semantics=("parallel",),  # batch tiles are independent
        ),
    )(y0_t, w1t, b1c, w2t, b2c)

    # (T*DIM, N_pad) -> (T, DIM, N_pad) -> (T, N, DIM).
    # TODO(synk): for very large batches accept/return lane-dense layouts to
    # avoid these wrapper-side HBM relayouts (negligible at small N).
    y = jnp.transpose(y_pad.reshape(num_t, DIM, n_pad), (0, 2, 1))[:, :n, :]
    return t_seq, y


def init_params(key):
    """Deterministic init mimicking nn.Linear (uniform +-1/sqrt(fan_in))."""
    k1, k2, k3, k4 = jax.random.split(key, 4)
    bound1 = 1.0 / jnp.sqrt(DIM)
    bound2 = 1.0 / jnp.sqrt(HIDDEN)
    w1 = jax.random.uniform(k1, (DIM, HIDDEN), jnp.float32, -bound1, bound1)
    b1 = jax.random.uniform(k2, (HIDDEN,), jnp.float32, -bound1, bound1)
    w2 = jax.random.uniform(k3, (HIDDEN, DIM), jnp.float32, -bound2, bound2)
    b2 = jax.random.uniform(k4, (DIM,), jnp.float32, -bound2, bound2)
    return w1, b1, w2, b2


def _reference_forward(x, params, *, t_f=0.05, dt=0.01):
    """Pure-JAX reference (same 3/8-rule RK4) for validation."""
    w1, b1, w2, b2 = params
    f = lambda y: jnp.dot(jnp.tanh(jnp.dot(y, w1) + b1), w2) + b2
    y = x.reshape(-1, DIM).astype(jnp.float32)
    t_seq = jnp.arange(0.0, t_f, dt, dtype=jnp.float32)
    ys = [y]
    for _ in range(int(t_seq.shape[0]) - 1):
        k1 = f(y)
        k2 = f(y + dt * k1 / 3.0)
        k3 = f(y + dt * (k2 - k1 / 3.0))
        k4 = f(y + dt * (k1 - k2 + k3))
        y = y + dt * (k1 + 3.0 * (k2 + k3) + k4) * 0.125
        ys.append(y)
    return t_seq, jnp.stack(ys, axis=0)


if __name__ == "__main__":
    key = jax.random.PRNGKey(0)
    k_x, k_p = jax.random.split(key)

    # Input: batch of 8 3-D states (Net1 views input as (-1, 3)).
    x = jax.random.normal(k_x, (8, DIM), dtype=jnp.float32)
    params = init_params(k_p)

    t_seq, y = net1_forward(x, params, t_f=0.05, dt=0.01)
    y = jax.block_until_ready(y)

    # Validate against pure-JAX reference.
    t_ref, y_ref = _reference_forward(x, params, t_f=0.05, dt=0.01)
    assert y.shape == (int(t_seq.shape[0]), 8, DIM)
    assert jnp.allclose(t_seq, t_ref)
    assert jnp.allclose(y, y_ref, atol=1e-5, rtol=1e-5)

    print("KERNEL_OK")
</pallas_src>

<mosaic_0001>
module attributes {stable_mosaic.version = 11 : i64} {
  func.func @_ode_rk4_kernel(%arg0: i32, %arg1: memref<3x128xf32, #tpu.memory_space<vmem>>, %arg2: memref<32x3xf32, #tpu.memory_space<vmem>>, %arg3: memref<32x1xf32, #tpu.memory_space<vmem>>, %arg4: memref<3x32xf32, #tpu.memory_space<vmem>>, %arg5: memref<3x1xf32, #tpu.memory_space<vmem>>, %arg6: memref<15x128xf32, #tpu.memory_space<vmem>>) attributes {dimension_semantics = [#tpu.dimension_semantics<parallel>], iteration_bounds = array<i64: 1>, scalar_prefetch = 0 : i64, scratch_operands = 0 : i64, tpu.core_type = #tpu.core_type<tc>, window_params = [{transform_indices = @transform_0, window_bounds = array<i64: 3, 128>}, {pipeline_mode = #tpu.pipeline_mode<synchronous>, transform_indices = @transform_1, window_bounds = array<i64: 32, 3>}, {pipeline_mode = #tpu.pipeline_mode<synchronous>, transform_indices = @transform_2, window_bounds = array<i64: 32, 1>}, {pipeline_mode = #tpu.pipeline_mode<synchronous>, transform_indices = @transform_3, window_bounds = array<i64: 3, 32>}, {pipeline_mode = #tpu.pipeline_mode<synchronous>, transform_indices = @transform_4, window_bounds = array<i64: 3, 1>}, {transform_indices = @transform_5, window_bounds = array<i64: 15, 128>}]} {
    %c0 = arith.constant 0 : index
    %c0_0 = arith.constant 0 : index
    %0 = vector.load %arg2[%c0, %c0_0] : memref<32x3xf32, #tpu.memory_space<vmem>>, vector<32x3xf32>
    %c0_1 = arith.constant 0 : index
    %c0_2 = arith.constant 0 : index
    %1 = vector.load %arg4[%c0_1, %c0_2] : memref<3x32xf32, #tpu.memory_space<vmem>>, vector<3x32xf32>
    %c0_3 = arith.constant 0 : index
    %c0_4 = arith.constant 0 : index
    %2 = vector.load %arg3[%c0_3, %c0_4] : memref<32x1xf32, #tpu.memory_space<vmem>>, vector<32x1xf32>
    %3 = vector.shape_cast %2 : vector<32x1xf32> to vector<32x1xf32>
    %4 = vector.broadcast %3 : vector<32x1xf32> to vector<32x128xf32>
    %c0_5 = arith.constant 0 : index
    %c0_6 = arith.constant 0 : index
    %5 = vector.load %arg5[%c0_5, %c0_6] : memref<3x1xf32, #tpu.memory_space<vmem>>, vector<3x1xf32>
    %6 = vector.shape_cast %5 : vector<3x1xf32> to vector<3x1xf32>
    %7 = vector.broadcast %6 : vector<3x1xf32> to vector<3x128xf32>
    %c0_7 = arith.constant 0 : index
    %c0_8 = arith.constant 0 : index
    %8 = vector.load %arg1[%c0_7, %c0_8] : memref<3x128xf32, #tpu.memory_space<vmem>>, vector<3x128xf32>
    %c0_9 = arith.constant 0 : index
    %c0_10 = arith.constant 0 : index
    %9 = vector.load %arg6[%c0_9, %c0_10] : memref<15x128xf32, #tpu.memory_space<vmem>>, vector<3x128xf32>
    tpu.vector_store %arg6[%c0_9, %c0_10], %8 {strides = array<i32>} : memref<15x128xf32, #tpu.memory_space<vmem>>, vector<3x128xf32>,
    %cst = arith.constant dense<0.000000e+00> : vector<32x128xf32>
    %10 = tpu.matmul %0, %8, %cst {dimension_numbers = #tpu.dot_dimension_numbers<[1], [0], [0], [1], [0, 0, 1, 1], [], []>} : vector<32x3xf32>, vector<3x128xf32>, vector<32x128xf32> -> vector<32x128xf32>
    %11 = arith.addf %10, %4 : vector<32x128xf32>
    %12 = math.tanh %11 : vector<32x128xf32>
    %cst_11 = arith.constant dense<0.000000e+00> : vector<3x128xf32>
    %13 = tpu.matmul %1, %12, %cst_11 {dimension_numbers = #tpu.dot_dimension_numbers<[1], [0], [0], [1], [0, 0, 1, 1], [], []>} : vector<3x32xf32>, vector<32x128xf32>, vector<3x128xf32> -> vector<3x128xf32>
    %14 = arith.addf %13, %7 : vector<3x128xf32>
    %cst_12 = arith.constant 0.00333333341 : f32
    %15 = vector.broadcast %cst_12 : f32 to vector<3x128xf32>
    %16 = arith.mulf %15, %14 : vector<3x128xf32>
    %17 = arith.addf %8, %16 : vector<3x128xf32>
    %cst_13 = arith.constant dense<0.000000e+00> : vector<32x128xf32>
    %18 = tpu.matmul %0, %17, %cst_13 {dimension_numbers = #tpu.dot_dimension_numbers<[1], [0], [0], [1], [0, 0, 1, 1], [], []>} : vector<32x3xf32>, vector<3x128xf32>, vector<32x128xf32> -> vector<32x128xf32>
    %19 = arith.addf %18, %4 : vector<32x128xf32>
    %20 = math.tanh %19 : vector<32x128xf32>
    %cst_14 = arith.constant dense<0.000000e+00> : vector<3x128xf32>
    %21 = tpu.matmul %1, %20, %cst_14 {dimension_numbers = #tpu.dot_dimension_numbers<[1], [0], [0], [1], [0, 0, 1, 1], [], []>} : vector<3x32xf32>, vector<32x128xf32>, vector<3x128xf32> -> vector<3x128xf32>
    %22 = arith.addf %21, %7 : vector<3x128xf32>
    %cst_15 = arith.constant 0.333333343 : f32
    %23 = vector.broadcast %cst_15 : f32 to vector<3x128xf32>
    %24 = arith.mulf %23, %14 : vector<3x128xf32>
    %25 = arith.subf %22, %24 : vector<3x128xf32>
    %cst_16 = arith.constant 0.00999999977 : f32
    %26 = vector.broadcast %cst_16 : f32 to vector<3x128xf32>
    %27 = arith.mulf %26, %25 : vector<3x128xf32>
    %28 = arith.addf %8, %27 : vector<3x128xf32>
    %cst_17 = arith.constant dense<0.000000e+00> : vector<32x128xf32>
    %29 = tpu.matmul %0, %28, %cst_17 {dimension_numbers = #tpu.dot_dimension_numbers<[1], [0], [0], [1], [0, 0, 1, 1], [], []>} : vector<32x3xf32>, vector<3x128xf32>, vector<32x128xf32> -> vector<32x128xf32>
    %30 = arith.addf %29, %4 : vector<32x128xf32>
    %31 = math.tanh %30 : vector<32x128xf32>
    %cst_18 = arith.constant dense<0.000000e+00> : vector<3x128xf32>
    %32 = tpu.matmul %1, %31, %cst_18 {dimension_numbers = #tpu.dot_dimension_numbers<[1], [0], [0], [1], [0, 0, 1, 1], [], []>} : vector<3x32xf32>, vector<32x128xf32>, vector<3x128xf32> -> vector<3x128xf32>
    %33 = arith.addf %32, %7 : vector<3x128xf32>
    %34 = arith.subf %14, %22 : vector<3x128xf32>
    %35 = arith.addf %34, %33 : vector<3x128xf32>
    %cst_19 = arith.constant 0.00999999977 : f32
    %36 = vector.broadcast %cst_19 : f32 to vector<3x128xf32>
    %37 = arith.mulf %36, %35 : vector<3x128xf32>
    %38 = arith.addf %8, %37 : vector<3x128xf32>
    %cst_20 = arith.constant dense<0.000000e+00> : vector<32x128xf32>
    %39 = tpu.matmul %0, %38, %cst_20 {dimension_numbers = #tpu.dot_dimension_numbers<[1], [0], [0], [1], [0, 0, 1, 1], [], []>} : vector<32x3xf32>, vector<3x128xf32>, vector<32x128xf32> -> vector<32x128xf32>
    %40 = arith.addf %39, %4 : vector<32x128xf32>
    %41 = math.tanh %40 : vector<32x128xf32>
    %cst_21 = arith.constant dense<0.000000e+00> : vector<3x128xf32>
    %42 = tpu.matmul %1, %41, %cst_21 {dimension_numbers = #tpu.dot_dimension_numbers<[1], [0], [0], [1], [0, 0, 1, 1], [], []>} : vector<3x32xf32>, vector<32x128xf32>, vector<3x128xf32> -> vector<3x128xf32>
    %43 = arith.addf %42, %7 : vector<3x128xf32>
    %44 = arith.addf %22, %33 : vector<3x128xf32>
    %cst_22 = arith.constant 3.000000e+00 : f32
    %45 = vector.broadcast %cst_22 : f32 to vector<3x128xf32>
    %46 = arith.mulf %45, %44 : vector<3x128xf32>
    %47 = arith.addf %14, %46 : vector<3x128xf32>
    %48 = arith.addf %47, %43 : vector<3x128xf32>
    %cst_23 = arith.constant 1.250000e-03 : f32
    %49 = vector.broadcast %cst_23 : f32 to vector<3x128xf32>
    %50 = arith.mulf %49, %48 : vector<3x128xf32>
    %51 = arith.addf %8, %50 : vector<3x128xf32>
    %c3 = arith.constant 3 : index
    %c0_24 = arith.constant 0 : index
    %52 = vector.load %arg6[%c3, %c0_24] : memref<15x128xf32, #tpu.memory_space<vmem>>, vector<3x128xf32>
    tpu.vector_store %arg6[%c3, %c0_24], %51 {strides = array<i32>} : memref<15x128xf32, #tpu.memory_space<vmem>>, vector<3x128xf32>,
    %cst_25 = arith.constant dense<0.000000e+00> : vector<32x128xf32>
    %53 = tpu.matmul %0, %51, %cst_25 {dimension_numbers = #tpu.dot_dimension_numbers<[1], [0], [0], [1], [0, 0, 1, 1], [], []>} : vector<32x3xf32>, vector<3x128xf32>, vector<32x128xf32> -> vector<32x128xf32>
    %54 = arith.addf %53, %4 : vector<32x128xf32>
    %55 = math.tanh %54 : vector<32x128xf32>
    %cst_26 = arith.constant dense<0.000000e+00> : vector<3x128xf32>
    %56 = tpu.matmul %1, %55, %cst_26 {dimension_numbers = #tpu.dot_dimension_numbers<[1], [0], [0], [1], [0, 0, 1, 1], [], []>} : vector<3x32xf32>, vector<32x128xf32>, vector<3x128xf32> -> vector<3x128xf32>
    %57 = arith.addf %56, %7 : vector<3x128xf32>
    %cst_27 = arith.constant 0.00333333341 : f32
    %58 = vector.broadcast %cst_27 : f32 to vector<3x128xf32>
    %59 = arith.mulf %58, %57 : vector<3x128xf32>
    %60 = arith.addf %51, %59 : vector<3x128xf32>
    %cst_28 = arith.constant dense<0.000000e+00> : vector<32x128xf32>
    %61 = tpu.matmul %0, %60, %cst_28 {dimension_numbers = #tpu.dot_dimension_numbers<[1], [0], [0], [1], [0, 0, 1, 1], [], []>} : vector<32x3xf32>, vector<3x128xf32>, vector<32x128xf32> -> vector<32x128xf32>
    %62 = arith.addf %61, %4 : vector<32x128xf32>
    %63 = math.tanh %62 : vector<32x128xf32>
    %cst_29 = arith.constant dense<0.000000e+00> : vector<3x128xf32>
    %64 = tpu.matmul %1, %63, %cst_29 {dimension_numbers = #tpu.dot_dimension_numbers<[1], [0], [0], [1], [0, 0, 1, 1], [], []>} : vector<3x32xf32>, vector<32x128xf32>, vector<3x128xf32> -> vector<3x128xf32>
    %65 = arith.addf %64, %7 : vector<3x128xf32>
    %cst_30 = arith.constant 0.333333343 : f32
    %66 = vector.broadcast %cst_30 : f32 to vector<3x128xf32>
    %67 = arith.mulf %66, %57 : vector<3x128xf32>
    %68 = arith.subf %65, %67 : vector<3x128xf32>
    %cst_31 = arith.constant 0.00999999977 : f32
    %69 = vector.broadcast %cst_31 : f32 to vector<3x128xf32>
    %70 = arith.mulf %69, %68 : vector<3x128xf32>
    %71 = arith.addf %51, %70 : vector<3x128xf32>
    %cst_32 = arith.constant dense<0.000000e+00> : vector<32x128xf32>
    %72 = tpu.matmul %0, %71, %cst_32 {dimension_numbers = #tpu.dot_dimension_numbers<[1], [0], [0], [1], [0, 0, 1, 1], [], []>} : vector<32x3xf32>, vector<3x128xf32>, vector<32x128xf32> -> vector<32x128xf32>
    %73 = arith.addf %72, %4 : vector<32x128xf32>
    %74 = math.tanh %73 : vector<32x128xf32>
    %cst_33 = arith.constant dense<0.000000e+00> : vector<3x128xf32>
    %75 = tpu.matmul %1, %74, %cst_33 {dimension_numbers = #tpu.dot_dimension_numbers<[1], [0], [0], [1], [0, 0, 1, 1], [], []>} : vector<3x32xf32>, vector<32x128xf32>, vector<3x128xf32> -> vector<3x128xf32>
    %76 = arith.addf %75, %7 : vector<3x128xf32>
    %77 = arith.subf %57, %65 : vector<3x128xf32>
    %78 = arith.addf %77, %76 : vector<3x128xf32>
    %cst_34 = arith.constant 0.00999999977 : f32
    %79 = vector.broadcast %cst_34 : f32 to vector<3x128xf32>
    %80 = arith.mulf %79, %78 : vector<3x128xf32>
    %81 = arith.addf %51, %80 : vector<3x128xf32>
    %cst_35 = arith.constant dense<0.000000e+00> : vector<32x128xf32>
    %82 = tpu.matmul %0, %81, %cst_35 {dimension_numbers = #tpu.dot_dimension_numbers<[1], [0], [0], [1], [0, 0, 1, 1], [], []>} : vector<32x3xf32>, vector<3x128xf32>, vector<32x128xf32> -> vector<32x128xf32>
    %83 = arith.addf %82, %4 : vector<32x128xf32>
    %84 = math.tanh %83 : vector<32x128xf32>
    %cst_36 = arith.constant dense<0.000000e+00> : vector<3x128xf32>
    %85 = tpu.matmul %1, %84, %cst_36 {dimension_numbers = #tpu.dot_dimension_numbers<[1], [0], [0], [1], [0, 0, 1, 1], [], []>} : vector<3x32xf32>, vector<32x128xf32>, vector<3x128xf32> -> vector<3x128xf32>
    %86 = arith.addf %85, %7 : vector<3x128xf32>
    %87 = arith.addf %65, %76 : vector<3x128xf32>
    %cst_37 = arith.constant 3.000000e+00 : f32
    %88 = vector.broadcast %cst_37 : f32 to vector<3x128xf32>
    %89 = arith.mulf %88, %87 : vector<3x128xf32>
    %90 = arith.addf %57, %89 : vector<3x128xf32>
    %91 = arith.addf %90, %86 : vector<3x128xf32>
    %cst_38 = arith.constant 1.250000e-03 : f32
    %92 = vector.broadcast %cst_38 : f32 to vector<3x128xf32>
    %93 = arith.mulf %92, %91 : vector<3x128xf32>
    %94 = arith.addf %51, %93 : vector<3x128xf32>
    %c6 = arith.constant 6 : index
    %c0_39 = arith.constant 0 : index
    %95 = vector.load %arg6[%c6, %c0_39] : memref<15x128xf32, #tpu.memory_space<vmem>>, vector<3x128xf32>
    tpu.vector_store %arg6[%c6, %c0_39], %94 {strides = array<i32>} : memref<15x128xf32, #tpu.memory_space<vmem>>, vector<3x128xf32>,
    %cst_40 = arith.constant dense<0.000000e+00> : vector<32x128xf32>
    %96 = tpu.matmul %0, %94, %cst_40 {dimension_numbers = #tpu.dot_dimension_numbers<[1], [0], [0], [1], [0, 0, 1, 1], [], []>} : vector<32x3xf32>, vector<3x128xf32>, vector<32x128xf32> -> vector<32x128xf32>
    %97 = arith.addf %96, %4 : vector<32x128xf32>
    %98 = math.tanh %97 : vector<32x128xf32>
    %cst_41 = arith.constant dense<0.000000e+00> : vector<3x128xf32>
    %99 = tpu.matmul %1, %98, %cst_41 {dimension_numbers = #tpu.dot_dimension_numbers<[1], [0], [0], [1], [0, 0, 1, 1], [], []>} : vector<3x32xf32>, vector<32x128xf32>, vector<3x128xf32> -> vector<3x128xf32>
    %100 = arith.addf %99, %7 : vector<3x128xf32>
    %cst_42 = arith.constant 0.00333333341 : f32
    %101 = vector.broadcast %cst_42 : f32 to vector<3x128xf32>
    %102 = arith.mulf %101, %100 : vector<3x128xf32>
    %103 = arith.addf %94, %102 : vector<3x128xf32>
    %cst_43 = arith.constant dense<0.000000e+00> : vector<32x128xf32>
    %104 = tpu.matmul %0, %103, %cst_43 {dimension_numbers = #tpu.dot_dimension_numbers<[1], [0], [0], [1], [0, 0, 1, 1], [], []>} : vector<32x3xf32>, vector<3x128xf32>, vector<32x128xf32> -> vector<32x128xf32>
    %105 = arith.addf %104, %4 : vector<32x128xf32>
    %106 = math.tanh %105 : vector<32x128xf32>
    %cst_44 = arith.constant dense<0.000000e+00> : vector<3x128xf32>
    %107 = tpu.matmul %1, %106, %cst_44 {dimension_numbers = #tpu.dot_dimension_numbers<[1], [0], [0], [1], [0, 0, 1, 1], [], []>} : vector<3x32xf32>, vector<32x128xf32>, vector<3x128xf32> -> vector<3x128xf32>
    %108 = arith.addf %107, %7 : vector<3x128xf32>
    %cst_45 = arith.constant 0.333333343 : f32
    %109 = vector.broadcast %cst_45 : f32 to vector<3x128xf32>
    %110 = arith.mulf %109, %100 : vector<3x128xf32>
    %111 = arith.subf %108, %110 : vector<3x128xf32>
    %cst_46 = arith.constant 0.00999999977 : f32
    %112 = vector.broadcast %cst_46 : f32 to vector<3x128xf32>
    %113 = arith.mulf %112, %111 : vector<3x128xf32>
    %114 = arith.addf %94, %113 : vector<3x128xf32>
    %cst_47 = arith.constant dense<0.000000e+00> : vector<32x128xf32>
    %115 = tpu.matmul %0, %114, %cst_47 {dimension_numbers = #tpu.dot_dimension_numbers<[1], [0], [0], [1], [0, 0, 1, 1], [], []>} : vector<32x3xf32>, vector<3x128xf32>, vector<32x128xf32> -> vector<32x128xf32>
    %116 = arith.addf %115, %4 : vector<32x128xf32>
    %117 = math.tanh %116 : vector<32x128xf32>
    %cst_48 = arith.constant dense<0.000000e+00> : vector<3x128xf32>
    %118 = tpu.matmul %1, %117, %cst_48 {dimension_numbers = #tpu.dot_dimension_numbers<[1], [0], [0], [1], [0, 0, 1, 1], [], []>} : vector<3x32xf32>, vector<32x128xf32>, vector<3x128xf32> -> vector<3x128xf32>
    %119 = arith.addf %118, %7 : vector<3x128xf32>
    %120 = arith.subf %100, %108 : vector<3x128xf32>
    %121 = arith.addf %120, %119 : vector<3x128xf32>
    %cst_49 = arith.constant 0.00999999977 : f32
    %122 = vector.broadcast %cst_49 : f32 to vector<3x128xf32>
    %123 = arith.mulf %122, %121 : vector<3x128xf32>
    %124 = arith.addf %94, %123 : vector<3x128xf32>
    %cst_50 = arith.constant dense<0.000000e+00> : vector<32x128xf32>
    %125 = tpu.matmul %0, %124, %cst_50 {dimension_numbers = #tpu.dot_dimension_numbers<[1], [0], [0], [1], [0, 0, 1, 1], [], []>} : vector<32x3xf32>, vector<3x128xf32>, vector<32x128xf32> -> vector<32x128xf32>
    %126 = arith.addf %125, %4 : vector<32x128xf32>
    %127 = math.tanh %126 : vector<32x128xf32>
    %cst_51 = arith.constant dense<0.000000e+00> : vector<3x128xf32>
    %128 = tpu.matmul %1, %127, %cst_51 {dimension_numbers = #tpu.dot_dimension_numbers<[1], [0], [0], [1], [0, 0, 1, 1], [], []>} : vector<3x32xf32>, vector<32x128xf32>, vector<3x128xf32> -> vector<3x128xf32>
    %129 = arith.addf %128, %7 : vector<3x128xf32>
    %130 = arith.addf %108, %119 : vector<3x128xf32>
    %cst_52 = arith.constant 3.000000e+00 : f32
    %131 = vector.broadcast %cst_52 : f32 to vector<3x128xf32>
    %132 = arith.mulf %131, %130 : vector<3x128xf32>
    %133 = arith.addf %100, %132 : vector<3x128xf32>
    %134 = arith.addf %133, %129 : vector<3x128xf32>
    %cst_53 = arith.constant 1.250000e-03 : f32
    %135 = vector.broadcast %cst_53 : f32 to vector<3x128xf32>
    %136 = arith.mulf %135, %134 : vector<3x128xf32>
    %137 = arith.addf %94, %136 : vector<3x128xf32>
    %c9 = arith.constant 9 : index
    %c0_54 = arith.constant 0 : index
    %138 = vector.load %arg6[%c9, %c0_54] : memref<15x128xf32, #tpu.memory_space<vmem>>, vector<3x128xf32>
    tpu.vector_store %arg6[%c9, %c0_54], %137 {strides = array<i32>} : memref<15x128xf32, #tpu.memory_space<vmem>>, vector<3x128xf32>,
    %cst_55 = arith.constant dense<0.000000e+00> : vector<32x128xf32>
    %139 = tpu.matmul %0, %137, %cst_55 {dimension_numbers = #tpu.dot_dimension_numbers<[1], [0], [0], [1], [0, 0, 1, 1], [], []>} : vector<32x3xf32>, vector<3x128xf32>, vector<32x128xf32> -> vector<32x128xf32>
    %140 = arith.addf %139, %4 : vector<32x128xf32>
    %141 = math.tanh %140 : vector<32x128xf32>
    %cst_56 = arith.constant dense<0.000000e+00> : vector<3x128xf32>
    %142 = tpu.matmul %1, %141, %cst_56 {dimension_numbers = #tpu.dot_dimension_numbers<[1], [0], [0], [1], [0, 0, 1, 1], [], []>} : vector<3x32xf32>, vector<32x128xf32>, vector<3x128xf32> -> vector<3x128xf32>
    %143 = arith.addf %142, %7 : vector<3x128xf32>
    %cst_57 = arith.constant 0.00333333341 : f32
    %144 = vector.broadcast %cst_57 : f32 to vector<3x128xf32>
    %145 = arith.mulf %144, %143 : vector<3x128xf32>
    %146 = arith.addf %137, %145 : vector<3x128xf32>
    %cst_58 = arith.constant dense<0.000000e+00> : vector<32x128xf32>
    %147 = tpu.matmul %0, %146, %cst_58 {dimension_numbers = #tpu.dot_dimension_numbers<[1], [0], [0], [1], [0, 0, 1, 1], [], []>} : vector<32x3xf32>, vector<3x128xf32>, vector<32x128xf32> -> vector<32x128xf32>
    %148 = arith.addf %147, %4 : vector<32x128xf32>
    %149 = math.tanh %148 : vector<32x128xf32>
    %cst_59 = arith.constant dense<0.000000e+00> : vector<3x128xf32>
    %150 = tpu.matmul %1, %149, %cst_59 {dimension_numbers = #tpu.dot_dimension_numbers<[1], [0], [0], [1], [0, 0, 1, 1], [], []>} : vector<3x32xf32>, vector<32x128xf32>, vector<3x128xf32> -> vector<3x128xf32>
    %151 = arith.addf %150, %7 : vector<3x128xf32>
    %cst_60 = arith.constant 0.333333343 : f32
    %152 = vector.broadcast %cst_60 : f32 to vector<3x128xf32>
    %153 = arith.mulf %152, %143 : vector<3x128xf32>
    %154 = arith.subf %151, %153 : vector<3x128xf32>
    %cst_61 = arith.constant 0.00999999977 : f32
    %155 = vector.broadcast %cst_61 : f32 to vector<3x128xf32>
    %156 = arith.mulf %155, %154 : vector<3x128xf32>
    %157 = arith.addf %137, %156 : vector<3x128xf32>
    %cst_62 = arith.constant dense<0.000000e+00> : vector<32x128xf32>
    %158 = tpu.matmul %0, %157, %cst_62 {dimension_numbers = #tpu.dot_dimension_numbers<[1], [0], [0], [1], [0, 0, 1, 1], [], []>} : vector<32x3xf32>, vector<3x128xf32>, vector<32x128xf32> -> vector<32x128xf32>
    %159 = arith.addf %158, %4 : vector<32x128xf32>
    %160 = math.tanh %159 : vector<32x128xf32>
    %cst_63 = arith.constant dense<0.000000e+00> : vector<3x128xf32>
    %161 = tpu.matmul %1, %160, %cst_63 {dimension_numbers = #tpu.dot_dimension_numbers<[1], [0], [0], [1], [0, 0, 1, 1], [], []>} : vector<3x32xf32>, vector<32x128xf32>, vector<3x128xf32> -> vector<3x128xf32>
    %162 = arith.addf %161, %7 : vector<3x128xf32>
    %163 = arith.subf %143, %151 : vector<3x128xf32>
    %164 = arith.addf %163, %162 : vector<3x128xf32>
    %cst_64 = arith.constant 0.00999999977 : f32
    %165 = vector.broadcast %cst_64 : f32 to vector<3x128xf32>
    %166 = arith.mulf %165, %164 : vector<3x128xf32>
    %167 = arith.addf %137, %166 : vector<3x128xf32>
    %cst_65 = arith.constant dense<0.000000e+00> : vector<32x128xf32>
    %168 = tpu.matmul %0, %167, %cst_65 {dimension_numbers = #tpu.dot_dimension_numbers<[1], [0], [0], [1], [0, 0, 1, 1], [], []>} : vector<32x3xf32>, vector<3x128xf32>, vector<32x128xf32> -> vector<32x128xf32>
    %169 = arith.addf %168, %4 : vector<32x128xf32>
    %170 = math.tanh %169 : vector<32x128xf32>
    %cst_66 = arith.constant dense<0.000000e+00> : vector<3x128xf32>
    %171 = tpu.matmul %1, %170, %cst_66 {dimension_numbers = #tpu.dot_dimension_numbers<[1], [0], [0], [1], [0, 0, 1, 1], [], []>} : vector<3x32xf32>, vector<32x128xf32>, vector<3x128xf32> -> vector<3x128xf32>
    %172 = arith.addf %171, %7 : vector<3x128xf32>
    %173 = arith.addf %151, %162 : vector<3x128xf32>
    %cst_67 = arith.constant 3.000000e+00 : f32
    %174 = vector.broadcast %cst_67 : f32 to vector<3x128xf32>
    %175 = arith.mulf %174, %173 : vector<3x128xf32>
    %176 = arith.addf %143, %175 : vector<3x128xf32>
    %177 = arith.addf %176, %172 : vector<3x128xf32>
    %cst_68 = arith.constant 1.250000e-03 : f32
    %178 = vector.broadcast %cst_68 : f32 to vector<3x128xf32>
    %179 = arith.mulf %178, %177 : vector<3x128xf32>
    %180 = arith.addf %137, %179 : vector<3x128xf32>
    %c12 = arith.constant 12 : index
    %c0_69 = arith.constant 0 : index
    %181 = vector.load %arg6[%c12, %c0_69] : memref<15x128xf32, #tpu.memory_space<vmem>>, vector<3x128xf32>
    tpu.vector_store %arg6[%c12, %c0_69], %180 {strides = array<i32>} : memref<15x128xf32, #tpu.memory_space<vmem>>, vector<3x128xf32>,
    return
  }
  func.func @transform_0(%arg0: i32) -> (i32, i32) {
    %c0_i32 = arith.constant 0 : i32
    %c0_i32_0 = arith.constant 0 : i32
    return %c0_i32, %arg0 : i32, i32
  }
  func.func @transform_1(%arg0: i32) -> (i32, i32) {
    %c0_i32 = arith.constant 0 : i32
    %c0_i32_0 = arith.constant 0 : i32
    %c0_i32_1 = arith.constant 0 : i32
    return %c0_i32, %c0_i32_0 : i32, i32
  }
  func.func @transform_2(%arg0: i32) -> (i32, i32) {
    %c0_i32 = arith.constant 0 : i32
    %c0_i32_0 = arith.constant 0 : i32
    %c0_i32_1 = arith.constant 0 : i32
    return %c0_i32, %c0_i32_0 : i32, i32
  }
  func.func @transform_3(%arg0: i32) -> (i32, i32) {
    %c0_i32 = arith.constant 0 : i32
    %c0_i32_0 = arith.constant 0 : i32
    %c0_i32_1 = arith.constant 0 : i32
    return %c0_i32, %c0_i32_0 : i32, i32
  }
  func.func @transform_4(%arg0: i32) -> (i32, i32) {
    %c0_i32 = arith.constant 0 : i32
    %c0_i32_0 = arith.constant 0 : i32
    %c0_i32_1 = arith.constant 0 : i32
    return %c0_i32, %c0_i32_0 : i32, i32
  }
  func.func @transform_5(%arg0: i32) -> (i32, i32) {
    %c0_i32 = arith.constant 0 : i32
    %c0_i32_0 = arith.constant 0 : i32
    return %c0_i32, %arg0 : i32, i32
  }
}

</mosaic_0001>

<llo_original>
// kernel: tpu_custom_call.1
$region0: #{tpu_custom_call.1}
  #allocation0 [shape = 'u32[]', space=smem, size = 0x4, offset = 0x4, fixed_abs, tag = 'smem constant byte address 0x4 - core index']
  #allocation1 [shape = 'u32[144,128]{1,0:T(1,128)}', space=vmem, size = 0x12000, scoped, tag = 'internal scratch']
  %s0 = inlined_call_operand.vmem [shape: f32[3,128], index: 0, kind: input, shape index: {}]
  %s1 = inlined_call_operand.vmem [shape: f32[32,3], index: 1, kind: input, shape index: {}]
  %s2 = inlined_call_operand.vmem [shape: f32[32,1], index: 2, kind: input, shape index: {}]
  %s3 = inlined_call_operand.vmem [shape: f32[3,32], index: 3, kind: input, shape index: {}]
  %s4 = inlined_call_operand.vmem [shape: f32[3,1], index: 4, kind: input, shape index: {}]
  %s5 = inlined_call_operand.hbm [shape: f32[15,128], index: 5, kind: output, shape index: {}]
  %s6 = sld [smem:[#allocation0]]
  $region30: #{tpu_custom_call.1} parent=0
    _
  %s8 = ssub.s32 1, %s6
  %s9 = scalar_select 0, %s8, %s6
  $region1: #{tpu_custom_call.1} parent=0
    #allocation2 [shape = 'u8[8192]{0}', space=vmem, size = 0x2000, scoped, tag = 'output window, operand 0, single buffered']
    #allocation3 [shape = 's32[1]{0}', space=sflag, size = 0x4, scoped, tag = 'scoped memory for tpu_custom_call.1']
    %10 = vsyncpa [#allocation3], 0
    // Predicated region
    $region2: #{tpu_custom_call.1} parent=1 // pred_check
      _
    $region3: #{tpu_custom_call.1} parent=1 // pred_check_branch
      %12 = sbr.rel (0) target = $region5
    $region4: #{tpu_custom_call.1} parent=1 // pred_region
      _
    $region5: #{tpu_custom_call.1} parent=1 // pred_fallthru
      _
    // Predicated region
    $region6: #{tpu_custom_call.1} parent=1 // pred_check
      _
    $region7: #{tpu_custom_call.1} parent=1 // pred_check_branch
      %14 = sbr.rel (0) target = $region9
    $region8: #{tpu_custom_call.1} parent=1 // pred_region
      _
    $region9: #{tpu_custom_call.1} parent=1 // pred_fallthru
      _
    // Predicated region
    $region10: #{tpu_custom_call.1} parent=1 // pred_check
      _
    $region11: #{tpu_custom_call.1} parent=1 // pred_check_branch
      %16 = sbr.rel (0) target = $region13
    $region12: #{tpu_custom_call.1} parent=1 // pred_region
      _
    $region13: #{tpu_custom_call.1} parent=1 // pred_fallthru
      _
    // Predicated region
    $region14: #{tpu_custom_call.1} parent=1 // pred_check
      _
    $region15: #{tpu_custom_call.1} parent=1 // pred_check_branch
      %18 = sbr.rel (0) target = $region17
    $region16: #{tpu_custom_call.1} parent=1 // pred_region
      _
    $region17: #{tpu_custom_call.1} parent=1 // pred_fallthru
      _
    // Predicated region
    $region18: #{tpu_custom_call.1} parent=1 // pred_check
      _
    $region19: #{tpu_custom_call.1} parent=1 // pred_check_branch
      %20 = sbr.rel (0) target = $region21
    $region20: #{tpu_custom_call.1} parent=1 // pred_region
      _
    $region21: #{tpu_custom_call.1} parent=1 // pred_fallthru
      _
    %v21 = vld [vmem:[%s1] sm:$0xff]
    %v22 = vld [vmem:[%s1 + $0x8] sm:$0xff]
    %v23 = vld [vmem:[%s1 + $0x10] sm:$0xff]
    %v24 = vld [vmem:[%s1 + $0x18] sm:$0xff]
    %v25 = vld [vmem:[%s3] sm:$0x7]
    %v26 = vld [vmem:[%s2] sm:$0xff]
    %v27 = vld [vmem:[%s2 + $0x8] sm:$0xff]
    %v28 = vld [vmem:[%s2 + $0x10] sm:$0xff]
    %v29 = vld [vmem:[%s2 + $0x18] sm:$0xff]
    %31 = vset.pattern.permute.xlu0 0
    %32 = vperm.xlu0 %31, %v26
    %v33 = vpop.permute.xlu0 %32
    %36 = vset.pattern.permute.xlu0 0
    %37 = vperm.xlu0 %36, %v27
    %v38 = vpop.permute.xlu0 %37
    %41 = vset.pattern.permute.xlu0 0
    %42 = vperm.xlu0 %41, %v28
    %v43 = vpop.permute.xlu0 %42
    %46 = vset.pattern.permute.xlu0 0
    %47 = vperm.xlu0 %46, %v29
    %v48 = vpop.permute.xlu0 %47
    %v50 = vld [vmem:[%s4] sm:$0x7]
    %52 = vset.pattern.permute.xlu0 0
    %53 = vperm.xlu0 %52, %v50
    %v54 = vpop.permute.xlu0 %53
    %v56 = vld [vmem:[%s0] sm:$0x7]
    %57 = vst [vmem:[#allocation2] sm:$0x7] %v56
    %vm58 = vcmask 23552
    %v60 = vsel %vm58, %v21, 0
    %v63 = vsel %vm58, %v22, 0
    %v66 = vsel %vm58, %v23, 0
    %v69 = vsel %vm58, %v24, 0
    %vm71 = vcmask 1042432
    %v73 = vsel %vm71, %v56, 0
    %75 = vmatprep.subr.mxu0 0.0
    %76 = vmatpush1.msra.mxu0 %v73
    %77 = vmatprep.subr.mxu0 0.0
    %78 = vmatpush1.msra.mxu0 0.0
    %79 = vmatprep.subr.mxu0 0.0
    %80 = vmatpush1.msra.mxu0 0.0
    %81 = vmatprep.subr.mxu0 0.0
    %82 = vmatpush1.msra.mxu0 0.0
    %83 = vmatprep.subr.mxu0 0.0
    %84 = vmatpush1.msra.mxu0 0.0
    %85 = vmatprep.subr.mxu0 0.0
    %86 = vmatpush1.msra.mxu0 0.0
    %87 = vmatprep.subr.mxu0 0.0
    %88 = vmatpush1.msra.mxu0 0.0
    %89 = vmatprep.subr.mxu0 0.0
    %90 = vmatpush1.msra.mxu0 0.0
    %91 = vmatprep.subr.mxu0 0.0
    %92 = vmatpush1.msra.mxu0 0.0
    %93 = vmatprep.subr.mxu0 0.0
    %94 = vmatpush1.msra.mxu0 0.0
    %95 = vmatprep.subr.mxu0 0.0
    %96 = vmatpush1.msra.mxu0 0.0
    %97 = vmatprep.subr.mxu0 0.0
    %98 = vmatpush1.msra.mxu0 0.0
    %99 = vmatprep.subr.mxu0 0.0
    %100 = vmatpush1.msra.mxu0 0.0
    %101 = vmatprep.subr.mxu0 0.0
    %102 = vmatpush1.msra.mxu0 0.0
    %103 = vmatprep.subr.mxu0 0.0
    %104 = vmatpush1.msra.mxu0 0.0
    %105 = vmatprep.subr.mxu0 0.0
    %106 = vmatpush1.msra.mxu0 0.0
    %107 = vmatprep.subr.mxu0 0.0
    %108 = vmatpush1.msra.mxu0 0.0
    %109 = vmatprep.subr.mxu0 0.0
    %110 = vmatpush1.msra.mxu0 0.0
    %111 = vmatprep.subr.mxu0 0.0
    %112 = vmatpush1.msra.mxu0 0.0
    %113 = vmatprep.subr.mxu0 0.0
    %114 = vmatpush1.msra.mxu0 0.0
    %115 = vmatprep.subr.mxu0 0.0
    %116 = vmatpush1.msra.mxu0 0.0
    %117 = vmatprep.subr.mxu0 0.0
    %118 = vmatpush1.msra.mxu0 0.0
    %119 = vmatprep.subr.mxu0 0.0
    %120 = vmatpush1.msra.mxu0 0.0
    %121 = vmatprep.subr.mxu0 0.0
    %122 = vmatpush1.msra.mxu0 0.0
    %123 = vmatprep.subr.mxu0 0.0
    %124 = vmatpush1.msra.mxu0 0.0
    %125 = vmatprep.subr.mxu0 0.0
    %126 = vmatpush1.msra.mxu0 0.0
    %127 = vmatprep.subr.mxu0 0.0
    %128 = vmatpush1.msra.mxu0 0.0
    %129 = vmatprep.subr.mxu0 0.0
    %130 = vmatpush1.msra.mxu0 0.0
    %131 = vmatprep.subr.mxu0 0.0
    %132 = vmatpush1.msra.mxu0 0.0
    %133 = vmatprep.subr.mxu0 0.0
    %134 = vmatpush1.msra.mxu0 0.0
    %135 = vmatprep.subr.mxu0 0.0
    %136 = vmatpush1.msra.mxu0 0.0
    %137 = vmatprep.subr.mxu0 0.0
    %138 = vmatpush1.msra.mxu0 0.0
    %139 = vmatprep.mubr.f32.mxu0 0.0
    %140 = vmatmul.mubr.f32.gmra.mrb[0].mxu0 %v60
    %v141 = vpop.f32.mrb[0].mxu0
    %v142 = vadd.f32 %v33, %v141
    %v143 = vpop.f32.mrb[0].mxu0
    %144 = vmatprep.mubr.f32.mxu0 0.0
    %145 = vmatmul.mubr.f32.gmra.mrb[0].mxu0 %v63
    %v146 = vpop.f32.mrb[0].mxu0
    %v147 = vadd.f32 %v38, %v146
    %v148 = vpop.f32.mrb[0].mxu0
    %149 = vmatprep.mubr.f32.mxu0 0.0
    %150 = vmatmul.mubr.f32.gmra.mrb[0].mxu0 %v66
    %v151 = vpop.f32.mrb[0].mxu0
    %v152 = vadd.f32 %v43, %v151
    %v153 = vpop.f32.mrb[0].mxu0
    %154 = vmatprep.mubr.f32.mxu0 0.0
    %155 = vmatmul.mubr.f32.gmra.mrb[0].mxu0 %v69
    %v156 = vpop.f32.mrb[0].mxu0
    %v157 = vadd.f32 %v48, %v156
    %v158 = vpop.f32.mrb[0].mxu0
    %159 = vdwg.mxu0
    %v160 = vtanh.pop %v142
    %v161 = vtanh.pop %v147
    %v162 = vtanh.pop %v152
    %v163 = vtanh.pop %v157
    %vm164 = vcmask 261120
    %v166 = vsel %vm164, %v25, 0
    %168 = vmatprep.subr.mxu0 0.0
    %169 = vmatpush1.msra.mxu0 %v160
    %170 = vmatprep.subr.mxu0 0.0
    %171 = vmatpush1.msra.mxu0 %v161
    %172 = vmatprep.subr.mxu0 0.0
    %173 = vmatpush1.msra.mxu0 %v162
    %174 = vmatprep.subr.mxu0 0.0
    %175 = vmatpush1.msra.mxu0 %v163
    %176 = vmatprep.subr.mxu0 0.0
    %177 = vmatpush1.msra.mxu0 0.0
    %178 = vmatprep.subr.mxu0 0.0
    %179 = vmatpush1.msra.mxu0 0.0
    %180 = vmatprep.subr.mxu0 0.0
    %181 = vmatpush1.msra.mxu0 0.0
    %182 = vmatprep.subr.mxu0 0.0
    %183 = vmatpush1.msra.mxu0 0.0
    %184 = vmatprep.subr.mxu0 0.0
    %185 = vmatpush1.msra.mxu0 0.0
    %186 = vmatprep.subr.mxu0 0.0
    %187 = vmatpush1.msra.mxu0 0.0
    %188 = vmatprep.subr.mxu0 0.0
    %189 = vmatpush1.msra.mxu0 0.0
    %190 = vmatprep.subr.mxu0 0.0
    %191 = vmatpush1.msra.mxu0 0.0
    %192 = vmatprep.subr.mxu0 0.0
    %193 = vmatpush1.msra.mxu0 0.0
    %194 = vmatprep.subr.mxu0 0.0
    %195 = vmatpush1.msra.mxu0 0.0
    %196 = vmatprep.subr.mxu0 0.0
    %197 = vmatpush1.msra.mxu0 0.0
    %198 = vmatprep.subr.mxu0 0.0
    %199 = vmatpush1.msra.mxu0 0.0
    %200 = vmatprep.subr.mxu0 0.0
    %201 = vmatpush1.msra.mxu0 0.0
    %202 = vmatprep.subr.mxu0 0.0
    %203 = vmatpush1.msra.mxu0 0.0
    %204 = vmatprep.subr.mxu0 0.0
    %205 = vmatpush1.msra.mxu0 0.0
    %206 = vmatprep.subr.mxu0 0.0
    %207 = vmatpush1.msra.mxu0 0.0
    %208 = vmatprep.subr.mxu0 0.0
    %209 = vmatpush1.msra.mxu0 0.0
    %210 = vmatprep.subr.mxu0 0.0
    %211 = vmatpush1.msra.mxu0 0.0
    %212 = vmatprep.subr.mxu0 0.0
    %213 = vmatpush1.msra.mxu0 0.0
    %214 = vmatprep.subr.mxu0 0.0
    %215 = vmatpush1.msra.mxu0 0.0
    %216 = vmatprep.subr.mxu0 0.0
    %217 = vmatpush1.msra.mxu0 0.0
    %218 = vmatprep.subr.mxu0 0.0
    %219 = vmatpush1.msra.mxu0 0.0
    %220 = vmatprep.subr.mxu0 0.0
    %221 = vmatpush1.msra.mxu0 0.0
    %222 = vmatprep.subr.mxu0 0.0
    %223 = vmatpush1.msra.mxu0 0.0
    %224 = vmatprep.subr.mxu0 0.0
    %225 = vmatpush1.msra.mxu0 0.0
    %226 = vmatprep.subr.mxu0 0.0
    %227 = vmatpush1.msra.mxu0 0.0
    %228 = vmatprep.subr.mxu0 0.0
    %229 = vmatpush1.msra.mxu0 0.0
    %230 = vmatprep.subr.mxu0 0.0
    %231 = vmatpush1.msra.mxu0 0.0
    %232 = vmatprep.mubr.f32.mxu0 0.0
    %233 = vmatmul.mubr.f32.gmra.mrb[0].mxu0 %v166
    %v234 = vpop.f32.mrb[0].mxu0
    %v235 = vadd.f32 %v54, %v234
    %v236 = vpop.f32.mrb[0].mxu0
    %237 = vdwg.mxu0
    %v238 = vmul.f32 %v235, 0.0033333334
    %v239 = vadd.f32 %v56, %v238
    %v241 = vsel %vm71, %v239, 0
    %243 = vmatprep.subr.mxu0 0.0
    %244 = vmatpush1.msra.mxu0 %v241
    %245 = vmatprep.subr.mxu0 0.0
    %246 = vmatpush1.msra.mxu0 0.0
    %247 = vmatprep.subr.mxu0 0.0
    %248 = vmatpush1.msra.mxu0 0.0
    %249 = vmatprep.subr.mxu0 0.0
    %250 = vmatpush1.msra.mxu0 0.0
    %251 = vmatprep.subr.mxu0 0.0
    %252 = vmatpush1.msra.mxu0 0.0
    %253 = vmatprep.subr.mxu0 0.0
    %254 = vmatpush1.msra.mxu0 0.0
    %255 = vmatprep.subr.mxu0 0.0
    %256 = vmatpush1.msra.mxu0 0.0
    %257 = vmatprep.subr.mxu0 0.0
    %258 = vmatpush1.msra.mxu0 0.0
    %259 = vmatprep.subr.mxu0 0.0
    %260 = vmatpush1.msra.mxu0 0.0
    %261 = vmatprep.subr.mxu0 0.0
    %262 = vmatpush1.msra.mxu0 0.0
    %263 = vmatprep.subr.mxu0 0.0
    %264 = vmatpush1.msra.mxu0 0.0
    %265 = vmatprep.subr.mxu0 0.0
    %266 = vmatpush1.msra.mxu0 0.0
    %267 = vmatprep.subr.mxu0 0.0
    %268 = vmatpush1.msra.mxu0 0.0
    %269 = vmatprep.subr.mxu0 0.0
    %270 = vmatpush1.msra.mxu0 0.0
    %271 = vmatprep.subr.mxu0 0.0
    %272 = vmatpush1.msra.mxu0 0.0
    %273 = vmatprep.subr.mxu0 0.0
    %274 = vmatpush1.msra.mxu0 0.0
    %275 = vmatprep.subr.mxu0 0.0
    %276 = vmatpush1.msra.mxu0 0.0
    %277 = vmatprep.subr.mxu0 0.0
    %278 = vmatpush1.msra.mxu0 0.0
    %279 = vmatprep.subr.mxu0 0.0
    %280 = vmatpush1.msra.mxu0 0.0
    %281 = vmatprep.subr.mxu0 0.0
    %282 = vmatpush1.msra.mxu0 0.0
    %283 = vmatprep.subr.mxu0 0.0
    %284 = vmatpush1.msra.mxu0 0.0
    %285 = vmatprep.subr.mxu0 0.0
    %286 = vmatpush1.msra.mxu0 0.0
    %287 = vmatprep.subr.mxu0 0.0
    %288 = vmatpush1.msra.mxu0 0.0
    %289 = vmatprep.subr.mxu0 0.0
    %290 = vmatpush1.msra.mxu0 0.0
    %291 = vmatprep.subr.mxu0 0.0
    %292 = vmatpush1.msra.mxu0 0.0
    %293 = vmatprep.subr.mxu0 0.0
    %294 = vmatpush1.msra.mxu0 0.0
    %295 = vmatprep.subr.mxu0 0.0
    %296 = vmatpush1.msra.mxu0 0.0
    %297 = vmatprep.subr.mxu0 0.0
    %298 = vmatpush1.msra.mxu0 0.0
    %299 = vmatprep.subr.mxu0 0.0
    %300 = vmatpush1.msra.mxu0 0.0
    %301 = vmatprep.subr.mxu0 0.0
    %302 = vmatpush1.msra.mxu0 0.0
    %303 = vmatprep.subr.mxu0 0.0
    %304 = vmatpush1.msra.mxu0 0.0
    %305 = vmatprep.subr.mxu0 0.0
    %306 = vmatpush1.msra.mxu0 0.0
    %307 = vmatprep.mubr.f32.mxu0 0.0
    %308 = vmatmul.mubr.f32.gmra.mrb[0].mxu0 %v60
    %v309 = vpop.f32.mrb[0].mxu0
    %v310 = vadd.f32 %v33, %v309
    %v311 = vpop.f32.mrb[0].mxu0
    %312 = vmatprep.mubr.f32.mxu0 0.0
    %313 = vmatmul.mubr.f32.gmra.mrb[0].mxu0 %v63
    %v314 = vpop.f32.mrb[0].mxu0
    %v315 = vadd.f32 %v38, %v314
    %v316 = vpop.f32.mrb[0].mxu0
    %317 = vmatprep.mubr.f32.mxu0 0.0
    %318 = vmatmul.mubr.f32.gmra.mrb[0].mxu0 %v66
    %v319 = vpop.f32.mrb[0].mxu0
    %v320 = vadd.f32 %v43, %v319
    %v321 = vpop.f32.mrb[0].mxu0
    %322 = vmatprep.mubr.f32.mxu0 0.0
    %323 = vmatmul.mubr.f32.gmra.mrb[0].mxu0 %v69
    %v324 = vpop.f32.mrb[0].mxu0
    %v325 = vadd.f32 %v48, %v324
    %v326 = vpop.f32.mrb[0].mxu0
    %327 = vdwg.mxu0
    %v328 = vtanh.pop %v310
    %v329 = vtanh.pop %v315
    %v330 = vtanh.pop %v320
    %v331 = vtanh.pop %v325
    %332 = vmatprep.subr.mxu0 0.0
    %333 = vmatpush1.msra.mxu0 %v328
    %334 = vmatprep.subr.mxu0 0.0
    %335 = vmatpush1.msra.mxu0 %v329
    %336 = vmatprep.subr.mxu0 0.0
    %337 = vmatpush1.msra.mxu0 %v330
    %338 = vmatprep.subr.mxu0 0.0
    %339 = vmatpush1.msra.mxu0 %v331
    %340 = vmatprep.subr.mxu0 0.0
    %341 = vmatpush1.msra.mxu0 0.0
    %342 = vmatprep.subr.mxu0 0.0
    %343 = vmatpush1.msra.mxu0 0.0
    %344 = vmatprep.subr.mxu0 0.0
    %345 = vmatpush1.msra.mxu0 0.0
    %346 = vmatprep.subr.mxu0 0.0
    %347 = vmatpush1.msra.mxu0 0.0
    %348 = vmatprep.subr.mxu0 0.0
    %349 = vmatpush1.msra.mxu0 0.0
    %350 = vmatprep.subr.mxu0 0.0
    %351 = vmatpush1.msra.mxu0 0.0
    %352 = vmatprep.subr.mxu0 0.0
    %353 = vmatpush1.msra.mxu0 0.0
    %354 = vmatprep.subr.mxu0 0.0
    %355 = vmatpush1.msra.mxu0 0.0
    %356 = vmatprep.subr.mxu0 0.0
    %357 = vmatpush1.msra.mxu0 0.0
    %358 = vmatprep.subr.mxu0 0.0
    %359 = vmatpush1.msra.mxu0 0.0
    %360 = vmatprep.subr.mxu0 0.0
    %361 = vmatpush1.msra.mxu0 0.0
    %362 = vmatprep.subr.mxu0 0.0
    %363 = vmatpush1.msra.mxu0 0.0
    %364 = vmatprep.subr.mxu0 0.0
    %365 = vmatpush1.msra.mxu0 0.0
    %366 = vmatprep.subr.mxu0 0.0
    %367 = vmatpush1.msra.mxu0 0.0
    %368 = vmatprep.subr.mxu0 0.0
    %369 = vmatpush1.msra.mxu0 0.0
    %370 = vmatprep.subr.mxu0 0.0
    %371 = vmatpush1.msra.mxu0 0.0
    %372 = vmatprep.subr.mxu0 0.0
    %373 = vmatpush1.msra.mxu0 0.0
    %374 = vmatprep.subr.mxu0 0.0
    %375 = vmatpush1.msra.mxu0 0.0
    %376 = vmatprep.subr.mxu0 0.0
    %377 = vmatpush1.msra.mxu0 0.0
    %378 = vmatprep.subr.mxu0 0.0
    %379 = vmatpush1.msra.mxu0 0.0
    %380 = vmatprep.subr.mxu0 0.0
    %381 = vmatpush1.msra.mxu0 0.0
    %382 = vmatprep.subr.mxu0 0.0
    %383 = vmatpush1.msra.mxu0 0.0
    %384 = vmatprep.subr.mxu0 0.0
    %385 = vmatpush1.msra.mxu0 0.0
    %386 = vmatprep.subr.mxu0 0.0
    %387 = vmatpush1.msra.mxu0 0.0
    %388 = vmatprep.subr.mxu0 0.0
    %389 = vmatpush1.msra.mxu0 0.0
    %390 = vmatprep.subr.mxu0 0.0
    %391 = vmatpush1.msra.mxu0 0.0
    %392 = vmatprep.subr.mxu0 0.0
    %393 = vmatpush1.msra.mxu0 0.0
    %394 = vmatprep.subr.mxu0 0.0
    %395 = vmatpush1.msra.mxu0 0.0
    %396 = vmatprep.mubr.f32.mxu0 0.0
    %397 = vmatmul.mubr.f32.gmra.mrb[0].mxu0 %v166
    %v398 = vpop.f32.mrb[0].mxu0
    %v399 = vadd.f32 %v54, %v398
    %v400 = vpop.f32.mrb[0].mxu0
    %401 = vdwg.mxu0
    %v402 = vmul.f32 %v235, 0.33333334
    %v403 = vsub.f32 %v399, %v402
    %v404 = vmul.f32 %v403, 0.01
    %v405 = vadd.f32 %v56, %v404
    %v407 = vsel %vm71, %v405, 0
    %409 = vmatprep.subr.mxu0 0.0
    %410 = vmatpush1.msra.mxu0 %v407
    %411 = vmatprep.subr.mxu0 0.0
    %412 = vmatpush1.msra.mxu0 0.0
    %413 = vmatprep.subr.mxu0 0.0
    %414 = vmatpush1.msra.mxu0 0.0
    %415 = vmatprep.subr.mxu0 0.0
    %416 = vmatpush1.msra.mxu0 0.0
    %417 = vmatprep.subr.mxu0 0.0
    %418 = vmatpush1.msra.mxu0 0.0
    %419 = vmatprep.subr.mxu0 0.0
    %420 = vmatpush1.msra.mxu0 0.0
    %421 = vmatprep.subr.mxu0 0.0
    %422 = vmatpush1.msra.mxu0 0.0
    %423 = vmatprep.subr.mxu0 0.0
    %424 = vmatpush1.msra.mxu0 0.0
    %425 = vmatprep.subr.mxu0 0.0
    %426 = vmatpush1.msra.mxu0 0.0
    %427 = vmatprep.subr.mxu0 0.0
    %428 = vmatpush1.msra.mxu0 0.0
    %429 = vmatprep.subr.mxu0 0.0
    %430 = vmatpush1.msra.mxu0 0.0
    %431 = vmatprep.subr.mxu0 0.0
    %432 = vmatpush1.msra.mxu0 0.0
    %433 = vmatprep.subr.mxu0 0.0
    %434 = vmatpush1.msra.mxu0 0.0
    %435 = vmatprep.subr.mxu0 0.0
    %436 = vmatpush1.msra.mxu0 0.0
    %437 = vmatprep.subr.mxu0 0.0
    %438 = vmatpush1.msra.mxu0 0.0
    %439 = vmatprep.subr.mxu0 0.0
    %440 = vmatpush1.msra.mxu0 0.0
    %441 = vmatprep.subr.mxu0 0.0
    %442 = vmatpush1.msra.mxu0 0.0
    %443 = vmatprep.subr.mxu0 0.0
    %444 = vmatpush1.msra.mxu0 0.0
    %445 = vmatprep.subr.mxu0 0.0
    %446 = vmatpush1.msra.mxu0 0.0
    %447 = vmatprep.subr.mxu0 0.0
    %448 = vmatpush1.msra.mxu0 0.0
    %449 = vmatprep.subr.mxu0 0.0
    %450 = vmatpush1.msra.mxu0 0.0
    %451 = vmatprep.subr.mxu0 0.0
    %452 = vmatpush1.msra.mxu0 0.0
    %453 = vmatprep.subr.mxu0 0.0
    %454 = vmatpush1.msra.mxu0 0.0
    %455 = vmatprep.subr.mxu0 0.0
    %456 = vmatpush1.msra.mxu0 0.0
    %457 = vmatprep.subr.mxu0 0.0
    %458 = vmatpush1.msra.mxu0 0.0
    %459 = vmatprep.subr.mxu0 0.0
    %460 = vmatpush1.msra.mxu0 0.0
    %461 = vmatprep.subr.mxu0 0.0
    %462 = vmatpush1.msra.mxu0 0.0
    %463 = vmatprep.subr.mxu0 0.0
    %464 = vmatpush1.msra.mxu0 0.0
    %465 = vmatprep.subr.mxu0 0.0
    %466 = vmatpush1.msra.mxu0 0.0
    %467 = vmatprep.subr.mxu0 0.0
    %468 = vmatpush1.msra.mxu0 0.0
    %469 = vmatprep.subr.mxu0 0.0
    %470 = vmatpush1.msra.mxu0 0.0
    %471 = vmatprep.subr.mxu0 0.0
    %472 = vmatpush1.msra.mxu0 0.0
    %473 = vmatprep.mubr.f32.mxu0 0.0
    %474 = vmatmul.mubr.f32.gmra.mrb[0].mxu0 %v60
    %v475 = vpop.f32.mrb[0].mxu0
    %v476 = vadd.f32 %v33, %v475
    %v477 = vpop.f32.mrb[0].mxu0
    %478 = vmatprep.mubr.f32.mxu0 0.0
    %479 = vmatmul.mubr.f32.gmra.mrb[0].mxu0 %v63
    %v480 = vpop.f32.mrb[0].mxu0
    %v481 = vadd.f32 %v38, %v480
    %v482 = vpop.f32.mrb[0].mxu0
    %483 = vmatprep.mubr.f32.mxu0 0.0
    %484 = vmatmul.mubr.f32.gmra.mrb[0].mxu0 %v66
    %v485 = vpop.f32.mrb[0].mxu0
    %v486 = vadd.f32 %v43, %v485
    %v487 = vpop.f32.mrb[0].mxu0
    %488 = vmatprep.mubr.f32.mxu0 0.0
    %489 = vmatmul.mubr.f32.gmra.mrb[0].mxu0 %v69
    %v490 = vpop.f32.mrb[0].mxu0
    %v491 = vadd.f32 %v48, %v490
    %v492 = vpop.f32.mrb[0].mxu0
    %493 = vdwg.mxu0
    %v494 = vtanh.pop %v476
    %v495 = vtanh.pop %v481
    %v496 = vtanh.pop %v486
    %v497 = vtanh.pop %v491
    %498 = vmatprep.subr.mxu0 0.0
    %499 = vmatpush1.msra.mxu0 %v494
    %500 = vmatprep.subr.mxu0 0.0
    %501 = vmatpush1.msra.mxu0 %v495
    %502 = vmatprep.subr.mxu0 0.0
    %503 = vmatpush1.msra.mxu0 %v496
    %504 = vmatprep.subr.mxu0 0.0
    %505 = vmatpush1.msra.mxu0 %v497
    %506 = vmatprep.subr.mxu0 0.0
    %507 = vmatpush1.msra.mxu0 0.0
    %508 = vmatprep.subr.mxu0 0.0
    %509 = vmatpush1.msra.mxu0 0.0
    %510 = vmatprep.subr.mxu0 0.0
    %511 = vmatpush1.msra.mxu0 0.0
    %512 = vmatprep.subr.mxu0 0.0
    %513 = vmatpush1.msra.mxu0 0.0
    %514 = vmatprep.subr.mxu0 0.0
    %515 = vmatpush1.msra.mxu0 0.0
    %516 = vmatprep.subr.mxu0 0.0
    %517 = vmatpush1.msra.mxu0 0.0
    %518 = vmatprep.subr.mxu0 0.0
    %519 = vmatpush1.msra.mxu0 0.0
    %520 = vmatprep.subr.mxu0 0.0
    %521 = vmatpush1.msra.mxu0 0.0
    %522 = vmatprep.subr.mxu0 0.0
    %523 = vmatpush1.msra.mxu0 0.0
    %524 = vmatprep.subr.mxu0 0.0
    %525 = vmatpush1.msra.mxu0 0.0
    %526 = vmatprep.subr.mxu0 0.0
    %527 = vmatpush1.msra.mxu0 0.0
    %528 = vmatprep.subr.mxu0 0.0
    %529 = vmatpush1.msra.mxu0 0.0
    %530 = vmatprep.subr.mxu0 0.0
    %531 = vmatpush1.msra.mxu0 0.0
    %532 = vmatprep.subr.mxu0 0.0
    %533 = vmatpush1.msra.mxu0 0.0
    %534 = vmatprep.subr.mxu0 0.0
    %535 = vmatpush1.msra.mxu0 0.0
    %536 = vmatprep.subr.mxu0 0.0
    %537 = vmatpush1.msra.mxu0 0.0
    %538 = vmatprep.subr.mxu0 0.0
    %539 = vmatpush1.msra.mxu0 0.0
    %540 = vmatprep.subr.mxu0 0.0
    %541 = vmatpush1.msra.mxu0 0.0
    %542 = vmatprep.subr.mxu0 0.0
    %543 = vmatpush1.msra.mxu0 0.0
    %544 = vmatprep.subr.mxu0 0.0
    %545 = vmatpush1.msra.mxu0 0.0
    %546 = vmatprep.subr.mxu0 0.0
    %547 = vmatpush1.msra.mxu0 0.0
    %548 = vmatprep.subr.mxu0 0.0
    %549 = vmatpush1.msra.mxu0 0.0
    %550 = vmatprep.subr.mxu0 0.0
    %551 = vmatpush1.msra.mxu0 0.0
    %552 = vmatprep.subr.mxu0 0.0
    %553 = vmatpush1.msra.mxu0 0.0
    %554 = vmatprep.subr.mxu0 0.0
    %555 = vmatpush1.msra.mxu0 0.0
    %556 = vmatprep.subr.mxu0 0.0
    %557 = vmatpush1.msra.mxu0 0.0
    %558 = vmatprep.subr.mxu0 0.0
    %559 = vmatpush1.msra.mxu0 0.0
    %560 = vmatprep.subr.mxu0 0.0
    %561 = vmatpush1.msra.mxu0 0.0
    %562 = vmatprep.mubr.f32.mxu0 0.0
    %563 = vmatmul.mubr.f32.gmra.mrb[0].mxu0 %v166
    %v564 = vpop.f32.mrb[0].mxu0
    %v565 = vadd.f32 %v54, %v564
    %v566 = vpop.f32.mrb[0].mxu0
    %567 = vdwg.mxu0
    %v568 = vsub.f32 %v235, %v399
    %v569 = vadd.f32 %v568, %v565
    %v570 = vmul.f32 %v569, 0.01
    %v571 = vadd.f32 %v56, %v570
    %v573 = vsel %vm71, %v571, 0
    %575 = vmatprep.subr.mxu0 0.0
    %576 = vmatpush1.msra.mxu0 %v573
    %577 = vmatprep.subr.mxu0 0.0
    %578 = vmatpush1.msra.mxu0 0.0
    %579 = vmatprep.subr.mxu0 0.0
    %580 = vmatpush1.msra.mxu0 0.0
    %581 = vmatprep.subr.mxu0 0.0
    %582 = vmatpush1.msra.mxu0 0.0
    %583 = vmatprep.subr.mxu0 0.0
    %584 = vmatpush1.msra.mxu0 0.0
    %585 = vmatprep.subr.mxu0 0.0
    %586 = vmatpush1.msra.mxu0 0.0
    %587 = vmatprep.subr.mxu0 0.0
    %588 = vmatpush1.msra.mxu0 0.0
    %589 = vmatprep.subr.mxu0 0.0
    %590 = vmatpush1.msra.mxu0 0.0
    %591 = vmatprep.subr.mxu0 0.0
    %592 = vmatpush1.msra.mxu0 0.0
    %593 = vmatprep.subr.mxu0 0.0
    %594 = vmatpush1.msra.mxu0 0.0
    %595 = vmatprep.subr.mxu0 0.0
    %596 = vmatpush1.msra.mxu0 0.0
    %597 = vmatprep.subr.mxu0 0.0
    %598 = vmatpush1.msra.mxu0 0.0
    %599 = vmatprep.subr.mxu0 0.0
    %600 = vmatpush1.msra.mxu0 0.0
    %601 = vmatprep.subr.mxu0 0.0
    %602 = vmatpush1.msra.mxu0 0.0
    %603 = vmatprep.subr.mxu0 0.0
    %604 = vmatpush1.msra.mxu0 0.0
    %605 = vmatprep.subr.mxu0 0.0
    %606 = vmatpush1.msra.mxu0 0.0
    %607 = vmatprep.subr.mxu0 0.0
    %608 = vmatpush1.msra.mxu0 0.0
    %609 = vmatprep.subr.mxu0 0.0
    %610 = vmatpush1.msra.mxu0 0.0
    %611 = vmatprep.subr.mxu0 0.0
    %612 = vmatpush1.msra.mxu0 0.0
    %613 = vmatprep.subr.mxu0 0.0
    %614 = vmatpush1.msra.mxu0 0.0
    %615 = vmatprep.subr.mxu0 0.0
    %616 = vmatpush1.msra.mxu0 0.0
    %617 = vmatprep.subr.mxu0 0.0
    %618 = vmatpush1.msra.mxu0 0.0
    %619 = vmatprep.subr.mxu0 0.0
    %620 = vmatpush1.msra.mxu0 0.0
    %621 = vmatprep.subr.mxu0 0.0
    %622 = vmatpush1.msra.mxu0 0.0
    %623 = vmatprep.subr.mxu0 0.0
    %624 = vmatpush1.msra.mxu0 0.0
    %625 = vmatprep.subr.mxu0 0.0
    %626 = vmatpush1.msra.mxu0 0.0
    %627 = vmatprep.subr.mxu0 0.0
    %628 = vmatpush1.msra.mxu0 0.0
    %629 = vmatprep.subr.mxu0 0.0
    %630 = vmatpush1.msra.mxu0 0.0
    %631 = vmatprep.subr.mxu0 0.0
    %632 = vmatpush1.msra.mxu0 0.0
    %633 = vmatprep.subr.mxu0 0.0
    %634 = vmatpush1.msra.mxu0 0.0
    %635 = vmatprep.subr.mxu0 0.0
    %636 = vmatpush1.msra.mxu0 0.0
    %637 = vmatprep.subr.mxu0 0.0
    %638 = vmatpush1.msra.mxu0 0.0
    %639 = vmatprep.mubr.f32.mxu0 0.0
    %640 = vmatmul.mubr.f32.gmra.mrb[0].mxu0 %v60
    %v641 = vpop.f32.mrb[0].mxu0
    %v642 = vadd.f32 %v33, %v641
    %v643 = vpop.f32.mrb[0].mxu0
    %644 = vmatprep.mubr.f32.mxu0 0.0
    %645 = vmatmul.mubr.f32.gmra.mrb[0].mxu0 %v63
    %v646 = vpop.f32.mrb[0].mxu0
    %v647 = vadd.f32 %v38, %v646
    %v648 = vpop.f32.mrb[0].mxu0
    %649 = vmatprep.mubr.f32.mxu0 0.0
    %650 = vmatmul.mubr.f32.gmra.mrb[0].mxu0 %v66
    %v651 = vpop.f32.mrb[0].mxu0
    %v652 = vadd.f32 %v43, %v651
    %v653 = vpop.f32.mrb[0].mxu0
    %654 = vmatprep.mubr.f32.mxu0 0.0
    %655 = vmatmul.mubr.f32.gmra.mrb[0].mxu0 %v69
    %v656 = vpop.f32.mrb[0].mxu0
    %v657 = vadd.f32 %v48, %v656
    %v658 = vpop.f32.mrb[0].mxu0
    %659 = vdwg.mxu0
    %v660 = vtanh.pop %v642
    %v661 = vtanh.pop %v647
    %v662 = vtanh.pop %v652
    %v663 = vtanh.pop %v657
    %664 = vmatprep.subr.mxu0 0.0
    %665 = vmatpush1.msra.mxu0 %v660
    %666 = vmatprep.subr.mxu0 0.0
    %667 = vmatpush1.msra.mxu0 %v661
    %668 = vmatprep.subr.mxu0 0.0
    %669 = vmatpush1.msra.mxu0 %v662
    %670 = vmatprep.subr.mxu0 0.0
    %671 = vmatpush1.msra.mxu0 %v663
    %672 = vmatprep.subr.mxu0 0.0
    %673 = vmatpush1.msra.mxu0 0.0
    %674 = vmatprep.subr.mxu0 0.0
    %675 = vmatpush1.msra.mxu0 0.0
    %676 = vmatprep.subr.mxu0 0.0
    %677 = vmatpush1.msra.mxu0 0.0
    %678 = vmatprep.subr.mxu0 0.0
    %679 = vmatpush1.msra.mxu0 0.0
    %680 = vmatprep.subr.mxu0 0.0
    %681 = vmatpush1.msra.mxu0 0.0
    %682 = vmatprep.subr.mxu0 0.0
    %683 = vmatpush1.msra.mxu0 0.0
    %684 = vmatprep.subr.mxu0 0.0
    %685 = vmatpush1.msra.mxu0 0.0
    %686 = vmatprep.subr.mxu0 0.0
    %687 = vmatpush1.msra.mxu0 0.0
    %688 = vmatprep.subr.mxu0 0.0
    %689 = vmatpush1.msra.mxu0 0.0
    %690 = vmatprep.subr.mxu0 0.0
    %691 = vmatpush1.msra.mxu0 0.0
    %692 = vmatprep.subr.mxu0 0.0
    %693 = vmatpush1.msra.mxu0 0.0
    %694 = vmatprep.subr.mxu0 0.0
    %695 = vmatpush1.msra.mxu0 0.0
    %696 = vmatprep.subr.mxu0 0.0
    %697 = vmatpush1.msra.mxu0 0.0
    %698 = vmatprep.subr.mxu0 0.0
    %699 = vmatpush1.msra.mxu0 0.0
    %700 = vmatprep.subr.mxu0 0.0
    %701 = vmatpush1.msra.mxu0 0.0
    %702 = vmatprep.subr.mxu0 0.0
    %703 = vmatpush1.msra.mxu0 0.0
    %704 = vmatprep.subr.mxu0 0.0
    %705 = vmatpush1.msra.mxu0 0.0
    %706 = vmatprep.subr.mxu0 0.0
    %707 = vmatpush1.msra.mxu0 0.0
    %708 = vmatprep.subr.mxu0 0.0
    %709 = vmatpush1.msra.mxu0 0.0
    %710 = vmatprep.subr.mxu0 0.0
    %711 = vmatpush1.msra.mxu0 0.0
    %712 = vmatprep.subr.mxu0 0.0
    %713 = vmatpush1.msra.mxu0 0.0
    %714 = vmatprep.subr.mxu0 0.0
    %715 = vmatpush1.msra.mxu0 0.0
    %716 = vmatprep.subr.mxu0 0.0
    %717 = vmatpush1.msra.mxu0 0.0
    %718 = vmatprep.subr.mxu0 0.0
    %719 = vmatpush1.msra.mxu0 0.0
    %720 = vmatprep.subr.mxu0 0.0
    %721 = vmatpush1.msra.mxu0 0.0
    %722 = vmatprep.subr.mxu0 0.0
    %723 = vmatpush1.msra.mxu0 0.0
    %724 = vmatprep.subr.mxu0 0.0
    %725 = vmatpush1.msra.mxu0 0.0
    %726 = vmatprep.subr.mxu0 0.0
    %727 = vmatpush1.msra.mxu0 0.0
    %728 = vmatprep.mubr.f32.mxu0 0.0
    %729 = vmatmul.mubr.f32.gmra.mrb[0].mxu0 %v166
    %v730 = vpop.f32.mrb[0].mxu0
    %v731 = vadd.f32 %v54, %v730
    %v732 = vpop.f32.mrb[0].mxu0
    %733 = vdwg.mxu0
    %v734 = vadd.f32 %v399, %v565
    %v735 = vmul.f32 %v734, 3.0
    %v736 = vadd.f32 %v235, %v735
    %v737 = vadd.f32 %v736, %v731
    %v738 = vmul.f32 %v737, 0.00125
    %v739 = vadd.f32 %v56, %v738
    %740 = vst [vmem:[#allocation2 + $0x3] sm:$0x7] %v739
    %v742 = vsel %vm71, %v739, 0
    %744 = vmatprep.subr.mxu0 0.0
    %745 = vmatpush1.msra.mxu0 %v742
    %746 = vmatprep.subr.mxu0 0.0
    %747 = vmatpush1.msra.mxu0 0.0
    %748 = vmatprep.subr.mxu0 0.0
    %749 = vmatpush1.msra.mxu0 0.0
    %750 = vmatprep.subr.mxu0 0.0
    %751 = vmatpush1.msra.mxu0 0.0
    %752 = vmatprep.subr.mxu0 0.0
    %753 = vmatpush1.msra.mxu0 0.0
    %754 = vmatprep.subr.mxu0 0.0
    %755 = vmatpush1.msra.mxu0 0.0
    %756 = vmatprep.subr.mxu0 0.0
    %757 = vmatpush1.msra.mxu0 0.0
    %758 = vmatprep.subr.mxu0 0.0
    %759 = vmatpush1.msra.mxu0 0.0
    %760 = vmatprep.subr.mxu0 0.0
    %761 = vmatpush1.msra.mxu0 0.0
    %762 = vmatprep.subr.mxu0 0.0
    %763 = vmatpush1.msra.mxu0 0.0
    %764 = vmatprep.subr.mxu0 0.0
    %765 = vmatpush1.msra.mxu0 0.0
    %766 = vmatprep.subr.mxu0 0.0
    %767 = vmatpush1.msra.mxu0 0.0
    %768 = vmatprep.subr.mxu0 0.0
    %769 = vmatpush1.msra.mxu0 0.0
    %770 = vmatprep.subr.mxu0 0.0
    %771 = vmatpush1.msra.mxu0 0.0
    %772 = vmatprep.subr.mxu0 0.0
    %773 = vmatpush1.msra.mxu0 0.0
    %774 = vmatprep.subr.mxu0 0.0
    %775 = vmatpush1.msra.mxu0 0.0
    %776 = vmatprep.subr.mxu0 0.0
    %777 = vmatpush1.msra.mxu0 0.0
    %778 = vmatprep.subr.mxu0 0.0
    %779 = vmatpush1.msra.mxu0 0.0
    %780 = vmatprep.subr.mxu0 0.0
    %781 = vmatpush1.msra.mxu0 0.0
    %782 = vmatprep.subr.mxu0 0.0
    %783 = vmatpush1.msra.mxu0 0.0
    %784 = vmatprep.subr.mxu0 0.0
    %785 = vmatpush1.msra.mxu0 0.0
    %786 = vmatprep.subr.mxu0 0.0
    %787 = vmatpush1.msra.mxu0 0.0
    %788 = vmatprep.subr.mxu0 0.0
    %789 = vmatpush1.msra.mxu0 0.0
    %790 = vmatprep.subr.mxu0 0.0
    %791 = vmatpush1.msra.mxu0 0.0
    %792 = vmatprep.subr.mxu0 0.0
    %793 = vmatpush1.msra.mxu0 0.0
    %794 = vmatprep.subr.mxu0 0.0
    %795 = vmatpush1.msra.mxu0 0.0
    %796 = vmatprep.subr.mxu0 0.0
    %797 = vmatpush1.msra.mxu0 0.0
    %798 = vmatprep.subr.mxu0 0.0
    %799 = vmatpush1.msra.mxu0 0.0
    %800 = vmatprep.subr.mxu0 0.0
    %801 = vmatpush1.msra.mxu0 0.0
    %802 = vmatprep.subr.mxu0 0.0
    %803 = vmatpush1.msra.mxu0 0.0
    %804 = vmatprep.subr.mxu0 0.0
    %805 = vmatpush1.msra.mxu0 0.0
    %806 = vmatprep.subr.mxu0 0.0
    %807 = vmatpush1.msra.mxu0 0.0
    %808 = vmatprep.mubr.f32.mxu0 0.0
    %809 = vmatmul.mubr.f32.gmra.mrb[0].mxu0 %v60
    %v810 = vpop.f32.mrb[0].mxu0
    %v811 = vadd.f32 %v33, %v810
    %v812 = vpop.f32.mrb[0].mxu0
    %813 = vmatprep.mubr.f32.mxu0 0.0
    %814 = vmatmul.mubr.f32.gmra.mrb[0].mxu0 %v63
    %v815 = vpop.f32.mrb[0].mxu0
    %v816 = vadd.f32 %v38, %v815
    %v817 = vpop.f32.mrb[0].mxu0
    %818 = vmatprep.mubr.f32.mxu0 0.0
    %819 = vmatmul.mubr.f32.gmra.mrb[0].mxu0 %v66
    %v820 = vpop.f32.mrb[0].mxu0
    %v821 = vadd.f32 %v43, %v820
    %v822 = vpop.f32.mrb[0].mxu0
    %823 = vmatprep.mubr.f32.mxu0 0.0
    %824 = vmatmul.mubr.f32.gmra.mrb[0].mxu0 %v69
    %v825 = vpop.f32.mrb[0].mxu0
    %v826 = vadd.f32 %v48, %v825
    %v827 = vpop.f32.mrb[0].mxu0
    %828 = vdwg.mxu0
    %v829 = vtanh.pop %v811
    %v830 = vtanh.pop %v816
    %v831 = vtanh.pop %v821
    %v832 = vtanh.pop %v826
    %833 = vmatprep.subr.mxu0 0.0
    %834 = vmatpush1.msra.mxu0 %v829
    %835 = vmatprep.subr.mxu0 0.0
    %836 = vmatpush1.msra.mxu0 %v830
    %837 = vmatprep.subr.mxu0 0.0
    %838 = vmatpush1.msra.mxu0 %v831
    %839 = vmatprep.subr.mxu0 0.0
    %840 = vmatpush1.msra.mxu0 %v832
    %841 = vmatprep.subr.mxu0 0.0
    %842 = vmatpush1.msra.mxu0 0.0
    %843 = vmatprep.subr.mxu0 0.0
    %844 = vmatpush1.msra.mxu0 0.0
    %845 = vmatprep.subr.mxu0 0.0
    %846 = vmatpush1.msra.mxu0 0.0
    %847 = vmatprep.subr.mxu0 0.0
    %848 = vmatpush1.msra.mxu0 0.0
    %849 = vmatprep.subr.mxu0 0.0
    %850 = vmatpush1.msra.mxu0 0.0
    %851 = vmatprep.subr.mxu0 0.0
    %852 = vmatpush1.msra.mxu0 0.0
    %853 = vmatprep.subr.mxu0 0.0
    %854 = vmatpush1.msra.mxu0 0.0
    %855 = vmatprep.subr.mxu0 0.0
    %856 = vmatpush1.msra.mxu0 0.0
    %857 = vmatprep.subr.mxu0 0.0
    %858 = vmatpush1.msra.mxu0 0.0
    %859 = vmatprep.subr.mxu0 0.0
    %860 = vmatpush1.msra.mxu0 0.0
    %861 = vmatprep.subr.mxu0 0.0
    %862 = vmatpush1.msra.mxu0 0.0
    %863 = vmatprep.subr.mxu0 0.0
    %864 = vmatpush1.msra.mxu0 0.0
    %865 = vmatprep.subr.mxu0 0.0
    %866 = vmatpush1.msra.mxu0 0.0
    %867 = vmatprep.subr.mxu0 0.0
    %868 = vmatpush1.msra.mxu0 0.0
    %869 = vmatprep.subr.mxu0 0.0
    %870 = vmatpush1.msra.mxu0 0.0
    %871 = vmatprep.subr.mxu0 0.0
    %872 = vmatpush1.msra.mxu0 0.0
    %873 = vmatprep.subr.mxu0 0.0
    %874 = vmatpush1.msra.mxu0 0.0
    %875 = vmatprep.subr.mxu0 0.0
    %876 = vmatpush1.msra.mxu0 0.0
    %877 = vmatprep.subr.mxu0 0.0
    %878 = vmatpush1.msra.mxu0 0.0
    %879 = vmatprep.subr.mxu0 0.0
    %880 = vmatpush1.msra.mxu0 0.0
    %881 = vmatprep.subr.mxu0 0.0
    %882 = vmatpush1.msra.mxu0 0.0
    %883 = vmatprep.subr.mxu0 0.0
    %884 = vmatpush1.msra.mxu0 0.0
    %885 = vmatprep.subr.mxu0 0.0
    %886 = vmatpush1.msra.mxu0 0.0
    %887 = vmatprep.subr.mxu0 0.0
    %888 = vmatpush1.msra.mxu0 0.0
    %889 = vmatprep.subr.mxu0 0.0
    %890 = vmatpush1.msra.mxu0 0.0
    %891 = vmatprep.subr.mxu0 0.0
    %892 = vmatpush1.msra.mxu0 0.0
    %893 = vmatprep.subr.mxu0 0.0
    %894 = vmatpush1.msra.mxu0 0.0
    %895 = vmatprep.subr.mxu0 0.0
    %896 = vmatpush1.msra.mxu0 0.0
    %897 = vmatprep.mubr.f32.mxu0 0.0
    %898 = vmatmul.mubr.f32.gmra.mrb[0].mxu0 %v166
    %v899 = vpop.f32.mrb[0].mxu0
    %v900 = vadd.f32 %v54, %v899
    %v901 = vpop.f32.mrb[0].mxu0
    %902 = vdwg.mxu0
    %v903 = vmul.f32 %v900, 0.0033333334
    %v904 = vadd.f32 %v739, %v903
    %v906 = vsel %vm71, %v904, 0
    %908 = vmatprep.subr.mxu0 0.0
    %909 = vmatpush1.msra.mxu0 %v906
    %910 = vmatprep.subr.mxu0 0.0
    %911 = vmatpush1.msra.mxu0 0.0
    %912 = vmatprep.subr.mxu0 0.0
    %913 = vmatpush1.msra.mxu0 0.0
    %914 = vmatprep.subr.mxu0 0.0
    %915 = vmatpush1.msra.mxu0 0.0
    %916 = vmatprep.subr.mxu0 0.0
    %917 = vmatpush1.msra.mxu0 0.0
    %918 = vmatprep.subr.mxu0 0.0
    %919 = vmatpush1.msra.mxu0 0.0
    %920 = vmatprep.subr.mxu0 0.0
    %921 = vmatpush1.msra.mxu0 0.0
    %922 = vmatprep.subr.mxu0 0.0
    %923 = vmatpush1.msra.mxu0 0.0
    %924 = vmatprep.subr.mxu0 0.0
    %925 = vmatpush1.msra.mxu0 0.0
    %926 = vmatprep.subr.mxu0 0.0
    %927 = vmatpush1.msra.mxu0 0.0
    %928 = vmatprep.subr.mxu0 0.0
    %929 = vmatpush1.msra.mxu0 0.0
    %930 = vmatprep.subr.mxu0 0.0
    %931 = vmatpush1.msra.mxu0 0.0
    %932 = vmatprep.subr.mxu0 0.0
    %933 = vmatpush1.msra.mxu0 0.0
    %934 = vmatprep.subr.mxu0 0.0
    %935 = vmatpush1.msra.mxu0 0.0
    %936 = vmatprep.subr.mxu0 0.0
    %937 = vmatpush1.msra.mxu0 0.0
    %938 = vmatprep.subr.mxu0 0.0
    %939 = vmatpush1.msra.mxu0 0.0
    %940 = vmatprep.subr.mxu0 0.0
    %941 = vmatpush1.msra.mxu0 0.0
    %942 = vmatprep.subr.mxu0 0.0
    %943 = vmatpush1.msra.mxu0 0.0
    %944 = vmatprep.subr.mxu0 0.0
    %945 = vmatpush1.msra.mxu0 0.0
    %946 = vmatprep.subr.mxu0 0.0
    %947 = vmatpush1.msra.mxu0 0.0
    %948 = vmatprep.subr.mxu0 0.0
    %949 = vmatpush1.msra.mxu0 0.0
    %950 = vmatprep.subr.mxu0 0.0
    %951 = vmatpush1.msra.mxu0 0.0
    %952 = vmatprep.subr.mxu0 0.0
    %953 = vmatpush1.msra.mxu0 0.0
    %954 = vmatprep.subr.mxu0 0.0
    %955 = vmatpush1.msra.mxu0 0.0
    %956 = vmatprep.subr.mxu0 0.0
    %957 = vmatpush1.msra.mxu0 0.0
    %958 = vmatprep.subr.mxu0 0.0
    %959 = vmatpush1.msra.mxu0 0.0
    %960 = vmatprep.subr.mxu0 0.0
    %961 = vmatpush1.msra.mxu0 0.0
    %962 = vmatprep.subr.mxu0 0.0
    %963 = vmatpush1.msra.mxu0 0.0
    %964 = vmatprep.subr.mxu0 0.0
    %965 = vmatpush1.msra.mxu0 0.0
    %966 = vmatprep.subr.mxu0 0.0
    %967 = vmatpush1.msra.mxu0 0.0
    %968 = vmatprep.subr.mxu0 0.0
    %969 = vmatpush1.msra.mxu0 0.0
    %970 = vmatprep.subr.mxu0 0.0
    %971 = vmatpush1.msra.mxu0 0.0
    %972 = vmatprep.mubr.f32.mxu0 0.0
    %973 = vmatmul.mubr.f32.gmra.mrb[0].mxu0 %v60
    %v974 = vpop.f32.mrb[0].mxu0
    %v975 = vadd.f32 %v33, %v974
    %v976 = vpop.f32.mrb[0].mxu0
    %977 = vmatprep.mubr.f32.mxu0 0.0
    %978 = vmatmul.mubr.f32.gmra.mrb[0].mxu0 %v63
    %v979 = vpop.f32.mrb[0].mxu0
    %v980 = vadd.f32 %v38, %v979
    %v981 = vpop.f32.mrb[0].mxu0
    %982 = vmatprep.mubr.f32.mxu0 0.0
    %983 = vmatmul.mubr.f32.gmra.mrb[0].mxu0 %v66
    %v984 = vpop.f32.mrb[0].mxu0
    %v985 = vadd.f32 %v43, %v984
    %v986 = vpop.f32.mrb[0].mxu0
    %987 = vmatprep.mubr.f32.mxu0 0.0
    %988 = vmatmul.mubr.f32.gmra.mrb[0].mxu0 %v69
    %v989 = vpop.f32.mrb[0].mxu0
    %v990 = vadd.f32 %v48, %v989
    %v991 = vpop.f32.mrb[0].mxu0
    %992 = vdwg.mxu0
    %v993 = vtanh.pop %v975
    %v994 = vtanh.pop %v980
    %v995 = vtanh.pop %v985
    %v996 = vtanh.pop %v990
    %997 = vmatprep.subr.mxu0 0.0
    %998 = vmatpush1.msra.mxu0 %v993
    %999 = vmatprep.subr.mxu0 0.0
    %1000 = vmatpush1.msra.mxu0 %v994
    %1001 = vmatprep.subr.mxu0 0.0
    %1002 = vmatpush1.msra.mxu0 %v995
    %1003 = vmatprep.subr.mxu0 0.0
    %1004 = vmatpush1.msra.mxu0 %v996
    %1005 = vmatprep.subr.mxu0 0.0
    %1006 = vmatpush1.msra.mxu0 0.0
    %1007 = vmatprep.subr.mxu0 0.0
    %1008 = vmatpush1.msra.mxu0 0.0
    %1009 = vmatprep.subr.mxu0 0.0
    %1010 = vmatpush1.msra.mxu0 0.0
    %1011 = vmatprep.subr.mxu0 0.0
    %1012 = vmatpush1.msra.mxu0 0.0
    %1013 = vmatprep.subr.mxu0 0.0
    %1014 = vmatpush1.msra.mxu0 0.0
    %1015 = vmatprep.subr.mxu0 0.0
    %1016 = vmatpush1.msra.mxu0 0.0
    %1017 = vmatprep.subr.mxu0 0.0
    %1018 = vmatpush1.msra.mxu0 0.0
    %1019 = vmatprep.subr.mxu0 0.0
    %1020 = vmatpush1.msra.mxu0 0.0
    %1021 = vmatprep.subr.mxu0 0.0
    %1022 = vmatpush1.msra.mxu0 0.0
    %1023 = vmatprep.subr.mxu0 0.0
    %1024 = vmatpush1.msra.mxu0 0.0
    %1025 = vmatprep.subr.mxu0 0.0
    %1026 = vmatpush1.msra.mxu0 0.0
    %1027 = vmatprep.subr.mxu0 0.0
    %1028 = vmatpush1.msra.mxu0 0.0
    %1029 = vmatprep.subr.mxu0 0.0
    %1030 = vmatpush1.msra.mxu0 0.0
    %1031 = vmatprep.subr.mxu0 0.0
    %1032 = vmatpush1.msra.mxu0 0.0
    %1033 = vmatprep.subr.mxu0 0.0
    %1034 = vmatpush1.msra.mxu0 0.0
    %1035 = vmatprep.subr.mxu0 0.0
    %1036 = vmatpush1.msra.mxu0 0.0
    %1037 = vmatprep.subr.mxu0 0.0
    %1038 = vmatpush1.msra.mxu0 0.0
    %1039 = vmatprep.subr.mxu0 0.0
    %1040 = vmatpush1.msra.mxu0 0.0
    %1041 = vmatprep.subr.mxu0 0.0
    %1042 = vmatpush1.msra.mxu0 0.0
    %1043 = vmatprep.subr.mxu0 0.0
    %1044 = vmatpush1.msra.mxu0 0.0
    %1045 = vmatprep.subr.mxu0 0.0
    %1046 = vmatpush1.msra.mxu0 0.0
    %1047 = vmatprep.subr.mxu0 0.0
    %1048 = vmatpush1.msra.mxu0 0.0
    %1049 = vmatprep.subr.mxu0 0.0
    %1050 = vmatpush1.msra.mxu0 0.0
    %1051 = vmatprep.subr.mxu0 0.0
    %1052 = vmatpush1.msra.mxu0 0.0
    %1053 = vmatprep.subr.mxu0 0.0
    %1054 = vmatpush1.msra.mxu0 0.0
    %1055 = vmatprep.subr.mxu0 0.0
    %1056 = vmatpush1.msra.mxu0 0.0
    %1057 = vmatprep.subr.mxu0 0.0
    %1058 = vmatpush1.msra.mxu0 0.0
    %1059 = vmatprep.subr.mxu0 0.0
    %1060 = vmatpush1.msra.mxu0 0.0
    %1061 = vmatprep.mubr.f32.mxu0 0.0
    %1062 = vmatmul.mubr.f32.gmra.mrb[0].mxu0 %v166
    %v1063 = vpop.f32.mrb[0].mxu0
    %v1064 = vadd.f32 %v54, %v1063
    %v1065 = vpop.f32.mrb[0].mxu0
    %1066 = vdwg.mxu0
    %v1067 = vmul.f32 %v900, 0.33333334
    %v1068 = vsub.f32 %v1064, %v1067
    %v1069 = vmul.f32 %v1068, 0.01
    %v1070 = vadd.f32 %v739, %v1069
    %v1072 = vsel %vm71, %v1070, 0
    %1074 = vmatprep.subr.mxu0 0.0
    %1075 = vmatpush1.msra.mxu0 %v1072
    %1076 = vmatprep.subr.mxu0 0.0
    %1077 = vmatpush1.msra.mxu0 0.0
    %1078 = vmatprep.subr.mxu0 0.0
    %1079 = vmatpush1.msra.mxu0 0.0
    %1080 = vmatprep.subr.mxu0 0.0
    %1081 = vmatpush1.msra.mxu0 0.0
    %1082 = vmatprep.subr.mxu0 0.0
    %1083 = vmatpush1.msra.mxu0 0.0
    %1084 = vmatprep.subr.mxu0 0.0
    %1085 = vmatpush1.msra.mxu0 0.0
    %1086 = vmatprep.subr.mxu0 0.0
    %1087 = vmatpush1.msra.mxu0 0.0
    %1088 = vmatprep.subr.mxu0 0.0
    %1089 = vmatpush1.msra.mxu0 0.0
    %1090 = vmatprep.subr.mxu0 0.0
    %1091 = vmatpush1.msra.mxu0 0.0
    %1092 = vmatprep.subr.mxu0 0.0
    %1093 = vmatpush1.msra.mxu0 0.0
    %1094 = vmatprep.subr.mxu0 0.0
    %1095 = vmatpush1.msra.mxu0 0.0
    %1096 = vmatprep.subr.mxu0 0.0
    %1097 = vmatpush1.msra.mxu0 0.0
    %1098 = vmatprep.subr.mxu0 0.0
    %1099 = vmatpush1.msra.mxu0 0.0
    %1100 = vmatprep.subr.mxu0 0.0
    %1101 = vmatpush1.msra.mxu0 0.0
    %1102 = vmatprep.subr.mxu0 0.0
    %1103 = vmatpush1.msra.mxu0 0.0
    %1104 = vmatprep.subr.mxu0 0.0
    %1105 = vmatpush1.msra.mxu0 0.0
    %1106 = vmatprep.subr.mxu0 0.0
    %1107 = vmatpush1.msra.mxu0 0.0
    %1108 = vmatprep.subr.mxu0 0.0
    %1109 = vmatpush1.msra.mxu0 0.0
    %1110 = vmatprep.subr.mxu0 0.0
    %1111 = vmatpush1.msra.mxu0 0.0
    %1112 = vmatprep.subr.mxu0 0.0
    %1113 = vmatpush1.msra.mxu0 0.0
    %1114 = vmatprep.subr.mxu0 0.0
    %1115 = vmatpush1.msra.mxu0 0.0
    %1116 = vmatprep.subr.mxu0 0.0
    %1117 = vmatpush1.msra.mxu0 0.0
    %1118 = vmatprep.subr.mxu0 0.0
    %1119 = vmatpush1.msra.mxu0 0.0
    %1120 = vmatprep.subr.mxu0 0.0
    %1121 = vmatpush1.msra.mxu0 0.0
    %1122 = vmatprep.subr.mxu0 0.0
    %1123 = vmatpush1.msra.mxu0 0.0
    %1124 = vmatprep.subr.mxu0 0.0
    %1125 = vmatpush1.msra.mxu0 0.0
    %1126 = vmatprep.subr.mxu0 0.0
    %1127 = vmatpush1.msra.mxu0 0.0
    %1128 = vmatprep.subr.mxu0 0.0
    %1129 = vmatpush1.msra.mxu0 0.0
    %1130 = vmatprep.subr.mxu0 0.0
    %1131 = vmatpush1.msra.mxu0 0.0
    %1132 = vmatprep.subr.mxu0 0.0
    %1133 = vmatpush1.msra.mxu0 0.0
    %1134 = vmatprep.subr.mxu0 0.0
    %1135 = vmatpush1.msra.mxu0 0.0
    %1136 = vmatprep.subr.mxu0 0.0
    %1137 = vmatpush1.msra.mxu0 0.0
    %1138 = vmatprep.mubr.f32.mxu0 0.0
    %1139 = vmatmul.mubr.f32.gmra.mrb[0].mxu0 %v60
    %v1140 = vpop.f32.mrb[0].mxu0
    %v1141 = vadd.f32 %v33, %v1140
    %v1142 = vpop.f32.mrb[0].mxu0
    %1143 = vmatprep.mubr.f32.mxu0 0.0
    %1144 = vmatmul.mubr.f32.gmra.mrb[0].mxu0 %v63
    %v1145 = vpop.f32.mrb[0].mxu0
    %v1146 = vadd.f32 %v38, %v1145
    %v1147 = vpop.f32.mrb[0].mxu0
    %1148 = vmatprep.mubr.f32.mxu0 0.0
    %1149 = vmatmul.mubr.f32.gmra.mrb[0].mxu0 %v66
    %v1150 = vpop.f32.mrb[0].mxu0
    %v1151 = vadd.f32 %v43, %v1150
    %v1152 = vpop.f32.mrb[0].mxu0
    %1153 = vmatprep.mubr.f32.mxu0 0.0
    %1154 = vmatmul.mubr.f32.gmra.mrb[0].mxu0 %v69
    %v1155 = vpop.f32.mrb[0].mxu0
    %v1156 = vadd.f32 %v48, %v1155
    %v1157 = vpop.f32.mrb[0].mxu0
    %1158 = vdwg.mxu0
    %v1159 = vtanh.pop %v1141
    %v1160 = vtanh.pop %v1146
    %v1161 = vtanh.pop %v1151
    %v1162 = vtanh.pop %v1156
    %1163 = vmatprep.subr.mxu0 0.0
    %1164 = vmatpush1.msra.mxu0 %v1159
    %1165 = vmatprep.subr.mxu0 0.0
    %1166 = vmatpush1.msra.mxu0 %v1160
    %1167 = vmatprep.subr.mxu0 0.0
    %1168 = vmatpush1.msra.mxu0 %v1161
    %1169 = vmatprep.subr.mxu0 0.0
    %1170 = vmatpush1.msra.mxu0 %v1162
    %1171 = vmatprep.subr.mxu0 0.0
    %1172 = vmatpush1.msra.mxu0 0.0
    %1173 = vmatprep.subr.mxu0 0.0
    %1174 = vmatpush1.msra.mxu0 0.0
    %1175 = vmatprep.subr.mxu0 0.0
    %1176 = vmatpush1.msra.mxu0 0.0
    %1177 = vmatprep.subr.mxu0 0.0
    %1178 = vmatpush1.msra.mxu0 0.0
    %1179 = vmatprep.subr.mxu0 0.0
    %1180 = vmatpush1.msra.mxu0 0.0
    %1181 = vmatprep.subr.mxu0 0.0
    %1182 = vmatpush1.msra.mxu0 0.0
    %1183 = vmatprep.subr.mxu0 0.0
    %1184 = vmatpush1.msra.mxu0 0.0
    %1185 = vmatprep.subr.mxu0 0.0
    %1186 = vmatpush1.msra.mxu0 0.0
    %1187 = vmatprep.subr.mxu0 0.0
    %1188 = vmatpush1.msra.mxu0 0.0
    %1189 = vmatprep.subr.mxu0 0.0
    %1190 = vmatpush1.msra.mxu0 0.0
    %1191 = vmatprep.subr.mxu0 0.0
    %1192 = vmatpush1.msra.mxu0 0.0
    %1193 = vmatprep.subr.mxu0 0.0
    %1194 = vmatpush1.msra.mxu0 0.0
    %1195 = vmatprep.subr.mxu0 0.0
    %1196 = vmatpush1.msra.mxu0 0.0
    %1197 = vmatprep.subr.mxu0 0.0
    %1198 = vmatpush1.msra.mxu0 0.0
    %1199 = vmatprep.subr.mxu0 0.0
    %1200 = vmatpush1.msra.mxu0 0.0
    %1201 = vmatprep.subr.mxu0 0.0
    %1202 = vmatpush1.msra.mxu0 0.0
    %1203 = vmatprep.subr.mxu0 0.0
    %1204 = vmatpush1.msra.mxu0 0.0
    %1205 = vmatprep.subr.mxu0 0.0
    %1206 = vmatpush1.msra.mxu0 0.0
    %1207 = vmatprep.subr.mxu0 0.0
    %1208 = vmatpush1.msra.mxu0 0.0
    %1209 = vmatprep.subr.mxu0 0.0
    %1210 = vmatpush1.msra.mxu0 0.0
    %1211 = vmatprep.subr.mxu0 0.0
    %1212 = vmatpush1.msra.mxu0 0.0
    %1213 = vmatprep.subr.mxu0 0.0
    %1214 = vmatpush1.msra.mxu0 0.0
    %1215 = vmatprep.subr.mxu0 0.0
    %1216 = vmatpush1.msra.mxu0 0.0
    %1217 = vmatprep.subr.mxu0 0.0
    %1218 = vmatpush1.msra.mxu0 0.0
    %1219 = vmatprep.subr.mxu0 0.0
    %1220 = vmatpush1.msra.mxu0 0.0
    %1221 = vmatprep.subr.mxu0 0.0
    %1222 = vmatpush1.msra.mxu0 0.0
    %1223 = vmatprep.subr.mxu0 0.0
    %1224 = vmatpush1.msra.mxu0 0.0
    %1225 = vmatprep.subr.mxu0 0.0
    %1226 = vmatpush1.msra.mxu0 0.0
    %1227 = vmatprep.mubr.f32.mxu0 0.0
    %1228 = vmatmul.mubr.f32.gmra.mrb[0].mxu0 %v166
    %v1229 = vpop.f32.mrb[0].mxu0
    %v1230 = vadd.f32 %v54, %v1229
    %v1231 = vpop.f32.mrb[0].mxu0
    %1232 = vdwg.mxu0
    %v1233 = vsub.f32 %v900, %v1064
    %v1234 = vadd.f32 %v1233, %v1230
    %v1235 = vmul.f32 %v1234, 0.01
    %v1236 = vadd.f32 %v739, %v1235
    %v1238 = vsel %vm71, %v1236, 0
    %1240 = vmatprep.subr.mxu0 0.0
    %1241 = vmatpush1.msra.mxu0 %v1238
    %1242 = vmatprep.subr.mxu0 0.0
    %1243 = vmatpush1.msra.mxu0 0.0
    %1244 = vmatprep.subr.mxu0 0.0
    %1245 = vmatpush1.msra.mxu0 0.0
    %1246 = vmatprep.subr.mxu0 0.0
    %1247 = vmatpush1.msra.mxu0 0.0
    %1248 = vmatprep.subr.mxu0 0.0
    %1249 = vmatpush1.msra.mxu0 0.0
    %1250 = vmatprep.subr.mxu0 0.0
    %1251 = vmatpush1.msra.mxu0 0.0
    %1252 = vmatprep.subr.mxu0 0.0
    %1253 = vmatpush1.msra.mxu0 0.0
    %1254 = vmatprep.subr.mxu0 0.0
    %1255 = vmatpush1.msra.mxu0 0.0
    %1256 = vmatprep.subr.mxu0 0.0
    %1257 = vmatpush1.msra.mxu0 0.0
    %1258 = vmatprep.subr.mxu0 0.0
    %1259 = vmatpush1.msra.mxu0 0.0
    %1260 = vmatprep.subr.mxu0 0.0
    %1261 = vmatpush1.msra.mxu0 0.0
    %1262 = vmatprep.subr.mxu0 0.0
    %1263 = vmatpush1.msra.mxu0 0.0
    %1264 = vmatprep.subr.mxu0 0.0
    %1265 = vmatpush1.msra.mxu0 0.0
    %1266 = vmatprep.subr.mxu0 0.0
    %1267 = vmatpush1.msra.mxu0 0.0
    %1268 = vmatprep.subr.mxu0 0.0
    %1269 = vmatpush1.msra.mxu0 0.0
    %1270 = vmatprep.subr.mxu0 0.0
    %1271 = vmatpush1.msra.mxu0 0.0
    %1272 = vmatprep.subr.mxu0 0.0
    %1273 = vmatpush1.msra.mxu0 0.0
    %1274 = vmatprep.subr.mxu0 0.0
    %1275 = vmatpush1.msra.mxu0 0.0
    %1276 = vmatprep.subr.mxu0 0.0
    %1277 = vmatpush1.msra.mxu0 0.0
    %1278 = vmatprep.subr.mxu0 0.0
    %1279 = vmatpush1.msra.mxu0 0.0
    %1280 = vmatprep.subr.mxu0 0.0
    %1281 = vmatpush1.msra.mxu0 0.0
    %1282 = vmatprep.subr.mxu0 0.0
    %1283 = vmatpush1.msra.mxu0 0.0
    %1284 = vmatprep.subr.mxu0 0.0
    %1285 = vmatpush1.msra.mxu0 0.0
    %1286 = vmatprep.subr.mxu0 0.0
    %1287 = vmatpush1.msra.mxu0 0.0
    %1288 = vmatprep.subr.mxu0 0.0
    %1289 = vmatpush1.msra.mxu0 0.0
    %1290 = vmatprep.subr.mxu0 0.0
    %1291 = vmatpush1.msra.mxu0 0.0
    %1292 = vmatprep.subr.mxu0 0.0
    %1293 = vmatpush1.msra.mxu0 0.0
    %1294 = vmatprep.subr.mxu0 0.0
    %1295 = vmatpush1.msra.mxu0 0.0
    %1296 = vmatprep.subr.mxu0 0.0
    %1297 = vmatpush1.msra.mxu0 0.0
    %1298 = vmatprep.subr.mxu0 0.0
    %1299 = vmatpush1.msra.mxu0 0.0
    %1300 = vmatprep.subr.mxu0 0.0
    %1301 = vmatpush1.msra.mxu0 0.0
    %1302 = vmatprep.subr.mxu0 0.0
    %1303 = vmatpush1.msra.mxu0 0.0
    %1304 = vmatprep.mubr.f32.mxu0 0.0
    %1305 = vmatmul.mubr.f32.gmra.mrb[0].mxu0 %v60
    %v1306 = vpop.f32.mrb[0].mxu0
    %v1307 = vadd.f32 %v33, %v1306
    %v1308 = vpop.f32.mrb[0].mxu0
    %1309 = vmatprep.mubr.f32.mxu0 0.0
    %1310 = vmatmul.mubr.f32.gmra.mrb[0].mxu0 %v63
    %v1311 = vpop.f32.mrb[0].mxu0
    %v1312 = vadd.f32 %v38, %v1311
    %v1313 = vpop.f32.mrb[0].mxu0
    %1314 = vmatprep.mubr.f32.mxu0 0.0
    %1315 = vmatmul.mubr.f32.gmra.mrb[0].mxu0 %v66
    %v1316 = vpop.f32.mrb[0].mxu0
    %v1317 = vadd.f32 %v43, %v1316
    %v1318 = vpop.f32.mrb[0].mxu0
    %1319 = vmatprep.mubr.f32.mxu0 0.0
    %1320 = vmatmul.mubr.f32.gmra.mrb[0].mxu0 %v69
    %v1321 = vpop.f32.mrb[0].mxu0
    %v1322 = vadd.f32 %v48, %v1321
    %v1323 = vpop.f32.mrb[0].mxu0
    %1324 = vdwg.mxu0
    %v1325 = vtanh.pop %v1307
    %v1326 = vtanh.pop %v1312
    %v1327 = vtanh.pop %v1317
    %v1328 = vtanh.pop %v1322
    %1329 = vmatprep.subr.mxu0 0.0
    %1330 = vmatpush1.msra.mxu0 %v1325
    %1331 = vmatprep.subr.mxu0 0.0
    %1332 = vmatpush1.msra.mxu0 %v1326
    %1333 = vmatprep.subr.mxu0 0.0
    %1334 = vmatpush1.msra.mxu0 %v1327
    %1335 = vmatprep.subr.mxu0 0.0
    %1336 = vmatpush1.msra.mxu0 %v1328
    %1337 = vmatprep.subr.mxu0 0.0
    %1338 = vmatpush1.msra.mxu0 0.0
    %1339 = vmatprep.subr.mxu0 0.0
    %1340 = vmatpush1.msra.mxu0 0.0
    %1341 = vmatprep.subr.mxu0 0.0
    %1342 = vmatpush1.msra.mxu0 0.0
    %1343 = vmatprep.subr.mxu0 0.0
    %1344 = vmatpush1.msra.mxu0 0.0
    %1345 = vmatprep.subr.mxu0 0.0
    %1346 = vmatpush1.msra.mxu0 0.0
    %1347 = vmatprep.subr.mxu0 0.0
    %1348 = vmatpush1.msra.mxu0 0.0
    %1349 = vmatprep.subr.mxu0 0.0
    %1350 = vmatpush1.msra.mxu0 0.0
    %1351 = vmatprep.subr.mxu0 0.0
    %1352 = vmatpush1.msra.mxu0 0.0
    %1353 = vmatprep.subr.mxu0 0.0
    %1354 = vmatpush1.msra.mxu0 0.0
    %1355 = vmatprep.subr.mxu0 0.0
    %1356 = vmatpush1.msra.mxu0 0.0
    %1357 = vmatprep.subr.mxu0 0.0
    %1358 = vmatpush1.msra.mxu0 0.0
    %1359 = vmatprep.subr.mxu0 0.0
    %1360 = vmatpush1.msra.mxu0 0.0
    %1361 = vmatprep.subr.mxu0 0.0
    %1362 = vmatpush1.msra.mxu0 0.0
    %1363 = vmatprep.subr.mxu0 0.0
    %1364 = vmatpush1.msra.mxu0 0.0
    %1365 = vmatprep.subr.mxu0 0.0
    %1366 = vmatpush1.msra.mxu0 0.0
    %1367 = vmatprep.subr.mxu0 0.0
    %1368 = vmatpush1.msra.mxu0 0.0
    %1369 = vmatprep.subr.mxu0 0.0
    %1370 = vmatpush1.msra.mxu0 0.0
    %1371 = vmatprep.subr.mxu0 0.0
    %1372 = vmatpush1.msra.mxu0 0.0
    %1373 = vmatprep.subr.mxu0 0.0
    %1374 = vmatpush1.msra.mxu0 0.0
    %1375 = vmatprep.subr.mxu0 0.0
    %1376 = vmatpush1.msra.mxu0 0.0
    %1377 = vmatprep.subr.mxu0 0.0
    %1378 = vmatpush1.msra.mxu0 0.0
    %1379 = vmatprep.subr.mxu0 0.0
    %1380 = vmatpush1.msra.mxu0 0.0
    %1381 = vmatprep.subr.mxu0 0.0
    %1382 = vmatpush1.msra.mxu0 0.0
    %1383 = vmatprep.subr.mxu0 0.0
    %1384 = vmatpush1.msra.mxu0 0.0
    %1385 = vmatprep.subr.mxu0 0.0
    %1386 = vmatpush1.msra.mxu0 0.0
    %1387 = vmatprep.subr.mxu0 0.0
    %1388 = vmatpush1.msra.mxu0 0.0
    %1389 = vmatprep.subr.mxu0 0.0
    %1390 = vmatpush1.msra.mxu0 0.0
    %1391 = vmatprep.subr.mxu0 0.0
    %1392 = vmatpush1.msra.mxu0 0.0
    %1393 = vmatprep.mubr.f32.mxu0 0.0
    %1394 = vmatmul.mubr.f32.gmra.mrb[0].mxu0 %v166
    %v1395 = vpop.f32.mrb[0].mxu0
    %v1396 = vadd.f32 %v54, %v1395
    %v1397 = vpop.f32.mrb[0].mxu0
    %1398 = vdwg.mxu0
    %v1399 = vadd.f32 %v1064, %v1230
    %v1400 = vmul.f32 %v1399, 3.0
    %v1401 = vadd.f32 %v900, %v1400
    %v1402 = vadd.f32 %v1401, %v1396
    %v1403 = vmul.f32 %v1402, 0.00125
    %v1404 = vadd.f32 %v739, %v1403
    %1405 = vst [vmem:[#allocation2 + $0x6] sm:$0x7] %v1404
    %v1407 = vsel %vm71, %v1404, 0
    %1409 = vmatprep.subr.mxu0 0.0
    %1410 = vmatpush1.msra.mxu0 %v1407
    %1411 = vmatprep.subr.mxu0 0.0
    %1412 = vmatpush1.msra.mxu0 0.0
    %1413 = vmatprep.subr.mxu0 0.0
    %1414 = vmatpush1.msra.mxu0 0.0
    %1415 = vmatprep.subr.mxu0 0.0
    %1416 = vmatpush1.msra.mxu0 0.0
    %1417 = vmatprep.subr.mxu0 0.0
    %1418 = vmatpush1.msra.mxu0 0.0
    %1419 = vmatprep.subr.mxu0 0.0
    %1420 = vmatpush1.msra.mxu0 0.0
    %1421 = vmatprep.subr.mxu0 0.0
    %1422 = vmatpush1.msra.mxu0 0.0
    %1423 = vmatprep.subr.mxu0 0.0
    %1424 = vmatpush1.msra.mxu0 0.0
    %1425 = vmatprep.subr.mxu0 0.0
    %1426 = vmatpush1.msra.mxu0 0.0
    %1427 = vmatprep.subr.mxu0 0.0
    %1428 = vmatpush1.msra.mxu0 0.0
    %1429 = vmatprep.subr.mxu0 0.0
    %1430 = vmatpush1.msra.mxu0 0.0
    %1431 = vmatprep.subr.mxu0 0.0
    %1432 = vmatpush1.msra.mxu0 0.0
    %1433 = vmatprep.subr.mxu0 0.0
    %1434 = vmatpush1.msra.mxu0 0.0
    %1435 = vmatprep.subr.mxu0 0.0
    %1436 = vmatpush1.msra.mxu0 0.0
    %1437 = vmatprep.subr.mxu0 0.0
    %1438 = vmatpush1.msra.mxu0 0.0
    %1439 = vmatprep.subr.mxu0 0.0
    %1440 = vmatpush1.msra.mxu0 0.0
    %1441 = vmatprep.subr.mxu0 0.0
    %1442 = vmatpush1.msra.mxu0 0.0
    %1443 = vmatprep.subr.mxu0 0.0
    %1444 = vmatpush1.msra.mxu0 0.0
    %1445 = vmatprep.subr.mxu0 0.0
    %1446 = vmatpush1.msra.mxu0 0.0
    %1447 = vmatprep.subr.mxu0 0.0
    %1448 = vmatpush1.msra.mxu0 0.0
    %1449 = vmatprep.subr.mxu0 0.0
    %1450 = vmatpush1.msra.mxu0 0.0
    %1451 = vmatprep.subr.mxu0 0.0
    %1452 = vmatpush1.msra.mxu0 0.0
    %1453 = vmatprep.subr.mxu0 0.0
    %1454 = vmatpush1.msra.mxu0 0.0
    %1455 = vmatprep.subr.mxu0 0.0
    %1456 = vmatpush1.msra.mxu0 0.0
    %1457 = vmatprep.subr.mxu0 0.0
    %1458 = vmatpush1.msra.mxu0 0.0
    %1459 = vmatprep.subr.mxu0 0.0
    %1460 = vmatpush1.msra.mxu0 0.0
    %1461 = vmatprep.subr.mxu0 0.0
    %1462 = vmatpush1.msra.mxu0 0.0
    %1463 = vmatprep.subr.mxu0 0.0
    %1464 = vmatpush1.msra.mxu0 0.0
    %1465 = vmatprep.subr.mxu0 0.0
    %1466 = vmatpush1.msra.mxu0 0.0
    %1467 = vmatprep.subr.mxu0 0.0
    %1468 = vmatpush1.msra.mxu0 0.0
    %1469 = vmatprep.subr.mxu0 0.0
    %1470 = vmatpush1.msra.mxu0 0.0
    %1471 = vmatprep.subr.mxu0 0.0
    %1472 = vmatpush1.msra.mxu0 0.0
    %1473 = vmatprep.mubr.f32.mxu0 0.0
    %1474 = vmatmul.mubr.f32.gmra.mrb[0].mxu0 %v60
    %v1475 = vpop.f32.mrb[0].mxu0
    %v1476 = vadd.f32 %v33, %v1475
    %v1477 = vpop.f32.mrb[0].mxu0
    %1478 = vmatprep.mubr.f32.mxu0 0.0
    %1479 = vmatmul.mubr.f32.gmra.mrb[0].mxu0 %v63
    %v1480 = vpop.f32.mrb[0].mxu0
    %v1481 = vadd.f32 %v38, %v1480
    %v1482 = vpop.f32.mrb[0].mxu0
    %1483 = vmatprep.mubr.f32.mxu0 0.0
    %1484 = vmatmul.mubr.f32.gmra.mrb[0].mxu0 %v66
    %v1485 = vpop.f32.mrb[0].mxu0
    %v1486 = vadd.f32 %v43, %v1485
    %v1487 = vpop.f32.mrb[0].mxu0
    %1488 = vmatprep.mubr.f32.mxu0 0.0
    %1489 = vmatmul.mubr.f32.gmra.mrb[0].mxu0 %v69
    %v1490 = vpop.f32.mrb[0].mxu0
    %v1491 = vadd.f32 %v48, %v1490
    %v1492 = vpop.f32.mrb[0].mxu0
    %1493 = vdwg.mxu0
    %v1494 = vtanh.pop %v1476
    %v1495 = vtanh.pop %v1481
    %v1496 = vtanh.pop %v1486
    %v1497 = vtanh.pop %v1491
    %1498 = vmatprep.subr.mxu0 0.0
    %1499 = vmatpush1.msra.mxu0 %v1494
    %1500 = vmatprep.subr.mxu0 0.0
    %1501 = vmatpush1.msra.mxu0 %v1495
    %1502 = vmatprep.subr.mxu0 0.0
    %1503 = vmatpush1.msra.mxu0 %v1496
    %1504 = vmatprep.subr.mxu0 0.0
    %1505 = vmatpush1.msra.mxu0 %v1497
    %1506 = vmatprep.subr.mxu0 0.0
    %1507 = vmatpush1.msra.mxu0 0.0
    %1508 = vmatprep.subr.mxu0 0.0
    %1509 = vmatpush1.msra.mxu0 0.0
    %1510 = vmatprep.subr.mxu0 0.0
    %1511 = vmatpush1.msra.mxu0 0.0
    %1512 = vmatprep.subr.mxu0 0.0
    %1513 = vmatpush1.msra.mxu0 0.0
    %1514 = vmatprep.subr.mxu0 0.0
    %1515 = vmatpush1.msra.mxu0 0.0
    %1516 = vmatprep.subr.mxu0 0.0
    %1517 = vmatpush1.msra.mxu0 0.0
    %1518 = vmatprep.subr.mxu0 0.0
    %1519 = vmatpush1.msra.mxu0 0.0
    %1520 = vmatprep.subr.mxu0 0.0
    %1521 = vmatpush1.msra.mxu0 0.0
    %1522 = vmatprep.subr.mxu0 0.0
    %1523 = vmatpush1.msra.mxu0 0.0
    %1524 = vmatprep.subr.mxu0 0.0
    %1525 = vmatpush1.msra.mxu0 0.0
    %1526 = vmatprep.subr.mxu0 0.0
    %1527 = vmatpush1.msra.mxu0 0.0
    %1528 = vmatprep.subr.mxu0 0.0
    %1529 = vmatpush1.msra.mxu0 0.0
    %1530 = vmatprep.subr.mxu0 0.0
    %1531 = vmatpush1.msra.mxu0 0.0
    %1532 = vmatprep.subr.mxu0 0.0
    %1533 = vmatpush1.msra.mxu0 0.0
    %1534 = vmatprep.subr.mxu0 0.0
    %1535 = vmatpush1.msra.mxu0 0.0
    %1536 = vmatprep.subr.mxu0 0.0
    %1537 = vmatpush1.msra.mxu0 0.0
    %1538 = vmatprep.subr.mxu0 0.0
    %1539 = vmatpush1.msra.mxu0 0.0
    %1540 = vmatprep.subr.mxu0 0.0
    %1541 = vmatpush1.msra.mxu0 0.0
    %1542 = vmatprep.subr.mxu0 0.0
    %1543 = vmatpush1.msra.mxu0 0.0
    %1544 = vmatprep.subr.mxu0 0.0
    %1545 = vmatpush1.msra.mxu0 0.0
    %1546 = vmatprep.subr.mxu0 0.0
    %1547 = vmatpush1.msra.mxu0 0.0
    %1548 = vmatprep.subr.mxu0 0.0
    %1549 = vmatpush1.msra.mxu0 0.0
    %1550 = vmatprep.subr.mxu0 0.0
    %1551 = vmatpush1.msra.mxu0 0.0
    %1552 = vmatprep.subr.mxu0 0.0
    %1553 = vmatpush1.msra.mxu0 0.0
    %1554 = vmatprep.subr.mxu0 0.0
    %1555 = vmatpush1.msra.mxu0 0.0
    %1556 = vmatprep.subr.mxu0 0.0
    %1557 = vmatpush1.msra.mxu0 0.0
    %1558 = vmatprep.subr.mxu0 0.0
    %1559 = vmatpush1.msra.mxu0 0.0
    %1560 = vmatprep.subr.mxu0 0.0
    %1561 = vmatpush1.msra.mxu0 0.0
    %1562 = vmatprep.mubr.f32.mxu0 0.0
    %1563 = vmatmul.mubr.f32.gmra.mrb[0].mxu0 %v166
    %v1564 = vpop.f32.mrb[0].mxu0
    %v1565 = vadd.f32 %v54, %v1564
    %v1566 = vpop.f32.mrb[0].mxu0
    %1567 = vdwg.mxu0
    %v1568 = vmul.f32 %v1565, 0.0033333334
    %v1569 = vadd.f32 %v1404, %v1568
    %v1571 = vsel %vm71, %v1569, 0
    %1573 = vmatprep.subr.mxu0 0.0
    %1574 = vmatpush1.msra.mxu0 %v1571
    %1575 = vmatprep.subr.mxu0 0.0
    %1576 = vmatpush1.msra.mxu0 0.0
    %1577 = vmatprep.subr.mxu0 0.0
    %1578 = vmatpush1.msra.mxu0 0.0
    %1579 = vmatprep.subr.mxu0 0.0
    %1580 = vmatpush1.msra.mxu0 0.0
    %1581 = vmatprep.subr.mxu0 0.0
    %1582 = vmatpush1.msra.mxu0 0.0
    %1583 = vmatprep.subr.mxu0 0.0
    %1584 = vmatpush1.msra.mxu0 0.0
    %1585 = vmatprep.subr.mxu0 0.0
    %1586 = vmatpush1.msra.mxu0 0.0
    %1587 = vmatprep.subr.mxu0 0.0
    %1588 = vmatpush1.msra.mxu0 0.0
    %1589 = vmatprep.subr.mxu0 0.0
    %1590 = vmatpush1.msra.mxu0 0.0
    %1591 = vmatprep.subr.mxu0 0.0
    %1592 = vmatpush1.msra.mxu0 0.0
    %1593 = vmatprep.subr.mxu0 0.0
    %1594 = vmatpush1.msra.mxu0 0.0
    %1595 = vmatprep.subr.mxu0 0.0
    %1596 = vmatpush1.msra.mxu0 0.0
    %1597 = vmatprep.subr.mxu0 0.0
    %1598 = vmatpush1.msra.mxu0 0.0
    %1599 = vmatprep.subr.mxu0 0.0
    %1600 = vmatpush1.msra.mxu0 0.0
    %1601 = vmatprep.subr.mxu0 0.0
    %1602 = vmatpush1.msra.mxu0 0.0
    %1603 = vmatprep.subr.mxu0 0.0
    %1604 = vmatpush1.msra.mxu0 0.0
    %1605 = vmatprep.subr.mxu0 0.0
    %1606 = vmatpush1.msra.mxu0 0.0
    %1607 = vmatprep.subr.mxu0 0.0
    %1608 = vmatpush1.msra.mxu0 0.0
    %1609 = vmatprep.subr.mxu0 0.0
    %1610 = vmatpush1.msra.mxu0 0.0
    %1611 = vmatprep.subr.mxu0 0.0
    %1612 = vmatpush1.msra.mxu0 0.0
    %1613 = vmatprep.subr.mxu0 0.0
    %1614 = vmatpush1.msra.mxu0 0.0
    %1615 = vmatprep.subr.mxu0 0.0
    %1616 = vmatpush1.msra.mxu0 0.0
    %1617 = vmatprep.subr.mxu0 0.0
    %1618 = vmatpush1.msra.mxu0 0.0
    %1619 = vmatprep.subr.mxu0 0.0
    %1620 = vmatpush1.msra.mxu0 0.0
    %1621 = vmatprep.subr.mxu0 0.0
    %1622 = vmatpush1.msra.mxu0 0.0
    %1623 = vmatprep.subr.mxu0 0.0
    %1624 = vmatpush1.msra.mxu0 0.0
    %1625 = vmatprep.subr.mxu0 0.0
    %1626 = vmatpush1.msra.mxu0 0.0
    %1627 = vmatprep.subr.mxu0 0.0
    %1628 = vmatpush1.msra.mxu0 0.0
    %1629 = vmatprep.subr.mxu0 0.0
    %1630 = vmatpush1.msra.mxu0 0.0
    %1631 = vmatprep.subr.mxu0 0.0
    %1632 = vmatpush1.msra.mxu0 0.0
    %1633 = vmatprep.subr.mxu0 0.0
    %1634 = vmatpush1.msra.mxu0 0.0
    %1635 = vmatprep.subr.mxu0 0.0
    %1636 = vmatpush1.msra.mxu0 0.0
    %1637 = vmatprep.mubr.f32.mxu0 0.0
    %1638 = vmatmul.mubr.f32.gmra.mrb[0].mxu0 %v60
    %v1639 = vpop.f32.mrb[0].mxu0
    %v1640 = vadd.f32 %v33, %v1639
    %v1641 = vpop.f32.mrb[0].mxu0
    %1642 = vmatprep.mubr.f32.mxu0 0.0
    %1643 = vmatmul.mubr.f32.gmra.mrb[0].mxu0 %v63
    %v1644 = vpop.f32.mrb[0].mxu0
    %v1645 = vadd.f32 %v38, %v1644
    %v1646 = vpop.f32.mrb[0].mxu0
    %1647 = vmatprep.mubr.f32.mxu0 0.0
    %1648 = vmatmul.mubr.f32.gmra.mrb[0].mxu0 %v66
    %v1649 = vpop.f32.mrb[0].mxu0
    %v1650 = vadd.f32 %v43, %v1649
    %v1651 = vpop.f32.mrb[0].mxu0
    %1652 = vmatprep.mubr.f32.mxu0 0.0
    %1653 = vmatmul.mubr.f32.gmra.mrb[0].mxu0 %v69
    %v1654 = vpop.f32.mrb[0].mxu0
    %v1655 = vadd.f32 %v48, %v1654
    %v1656 = vpop.f32.mrb[0].mxu0
    %1657 = vdwg.mxu0
    %v1658 = vtanh.pop %v1640
    %v1659 = vtanh.pop %v1645
    %v1660 = vtanh.pop %v1650
    %v1661 = vtanh.pop %v1655
    %1662 = vmatprep.subr.mxu0 0.0
    %1663 = vmatpush1.msra.mxu0 %v1658
    %1664 = vmatprep.subr.mxu0 0.0
    %1665 = vmatpush1.msra.mxu0 %v1659
    %1666 = vmatprep.subr.mxu0 0.0
    %1667 = vmatpush1.msra.mxu0 %v1660
    %1668 = vmatprep.subr.mxu0 0.0
    %1669 = vmatpush1.msra.mxu0 %v1661
    %1670 = vmatprep.subr.mxu0 0.0
    %1671 = vmatpush1.msra.mxu0 0.0
    %1672 = vmatprep.subr.mxu0 0.0
    %1673 = vmatpush1.msra.mxu0 0.0
    %1674 = vmatprep.subr.mxu0 0.0
    %1675 = vmatpush1.msra.mxu0 0.0
    %1676 = vmatprep.subr.mxu0 0.0
    %1677 = vmatpush1.msra.mxu0 0.0
    %1678 = vmatprep.subr.mxu0 0.0
    %1679 = vmatpush1.msra.mxu0 0.0
    %1680 = vmatprep.subr.mxu0 0.0
    %1681 = vmatpush1.msra.mxu0 0.0
    %1682 = vmatprep.subr.mxu0 0.0
    %1683 = vmatpush1.msra.mxu0 0.0
    %1684 = vmatprep.subr.mxu0 0.0
    %1685 = vmatpush1.msra.mxu0 0.0
    %1686 = vmatprep.subr.mxu0 0.0
    %1687 = vmatpush1.msra.mxu0 0.0
    %1688 = vmatprep.subr.mxu0 0.0
    %1689 = vmatpush1.msra.mxu0 0.0
    %1690 = vmatprep.subr.mxu0 0.0
    %1691 = vmatpush1.msra.mxu0 0.0
    %1692 = vmatprep.subr.mxu0 0.0
    %1693 = vmatpush1.msra.mxu0 0.0
    %1694 = vmatprep.subr.mxu0 0.0
    %1695 = vmatpush1.msra.mxu0 0.0
    %1696 = vmatprep.subr.mxu0 0.0
    %1697 = vmatpush1.msra.mxu0 0.0
    %1698 = vmatprep.subr.mxu0 0.0
    %1699 = vmatpush1.msra.mxu0 0.0
    %1700 = vmatprep.subr.mxu0 0.0
    %1701 = vmatpush1.msra.mxu0 0.0
    %1702 = vmatprep.subr.mxu0 0.0
    %1703 = vmatpush1.msra.mxu0 0.0
    %1704 = vmatprep.subr.mxu0 0.0
    %1705 = vmatpush1.msra.mxu0 0.0
    %1706 = vmatprep.subr.mxu0 0.0
    %1707 = vmatpush1.msra.mxu0 0.0
    %1708 = vmatprep.subr.mxu0 0.0
    %1709 = vmatpush1.msra.mxu0 0.0
    %1710 = vmatprep.subr.mxu0 0.0
    %1711 = vmatpush1.msra.mxu0 0.0
    %1712 = vmatprep.subr.mxu0 0.0
    %1713 = vmatpush1.msra.mxu0 0.0
    %1714 = vmatprep.subr.mxu0 0.0
    %1715 = vmatpush1.msra.mxu0 0.0
    %1716 = vmatprep.subr.mxu0 0.0
    %1717 = vmatpush1.msra.mxu0 0.0
    %1718 = vmatprep.subr.mxu0 0.0
    %1719 = vmatpush1.msra.mxu0 0.0
    %1720 = vmatprep.subr.mxu0 0.0
    %1721 = vmatpush1.msra.mxu0 0.0
    %1722 = vmatprep.subr.mxu0 0.0
    %1723 = vmatpush1.msra.mxu0 0.0
    %1724 = vmatprep.subr.mxu0 0.0
    %1725 = vmatpush1.msra.mxu0 0.0
    %1726 = vmatprep.mubr.f32.mxu0 0.0
    %1727 = vmatmul.mubr.f32.gmra.mrb[0].mxu0 %v166
    %v1728 = vpop.f32.mrb[0].mxu0
    %v1729 = vadd.f32 %v54, %v1728
    %v1730 = vpop.f32.mrb[0].mxu0
    %1731 = vdwg.mxu0
    %v1732 = vmul.f32 %v1565, 0.33333334
    %v1733 = vsub.f32 %v1729, %v1732
    %v1734 = vmul.f32 %v1733, 0.01
    %v1735 = vadd.f32 %v1404, %v1734
    %v1737 = vsel %vm71, %v1735, 0
    %1739 = vmatprep.subr.mxu0 0.0
    %1740 = vmatpush1.msra.mxu0 %v1737
    %1741 = vmatprep.subr.mxu0 0.0
    %1742 = vmatpush1.msra.mxu0 0.0
    %1743 = vmatprep.subr.mxu0 0.0
    %1744 = vmatpush1.msra.mxu0 0.0
    %1745 = vmatprep.subr.mxu0 0.0
    %1746 = vmatpush1.msra.mxu0 0.0
    %1747 = vmatprep.subr.mxu0 0.0
    %1748 = vmatpush1.msra.mxu0 0.0
    %1749 = vmatprep.subr.mxu0 0.0
    %1750 = vmatpush1.msra.mxu0 0.0
    %1751 = vmatprep.subr.mxu0 0.0
    %1752 = vmatpush1.msra.mxu0 0.0
    %1753 = vmatprep.subr.mxu0 0.0
    %1754 = vmatpush1.msra.mxu0 0.0
    %1755 = vmatprep.subr.mxu0 0.0
    %1756 = vmatpush1.msra.mxu0 0.0
    %1757 = vmatprep.subr.mxu0 0.0
    %1758 = vmatpush1.msra.mxu0 0.0
    %1759 = vmatprep.subr.mxu0 0.0
    %1760 = vmatpush1.msra.mxu0 0.0
    %1761 = vmatprep.subr.mxu0 0.0
    %1762 = vmatpush1.msra.mxu0 0.0
    %1763 = vmatprep.subr.mxu0 0.0
    %1764 = vmatpush1.msra.mxu0 0.0
    %1765 = vmatprep.subr.mxu0 0.0
    %1766 = vmatpush1.msra.mxu0 0.0
    %1767 = vmatprep.subr.mxu0 0.0
    %1768 = vmatpush1.msra.mxu0 0.0
    %1769 = vmatprep.subr.mxu0 0.0
    %1770 = vmatpush1.msra.mxu0 0.0
    %1771 = vmatprep.subr.mxu0 0.0
    %1772 = vmatpush1.msra.mxu0 0.0
    %1773 = vmatprep.subr.mxu0 0.0
    %1774 = vmatpush1.msra.mxu0 0.0
    %1775 = vmatprep.subr.mxu0 0.0
    %1776 = vmatpush1.msra.mxu0 0.0
    %1777 = vmatprep.subr.mxu0 0.0
    %1778 = vmatpush1.msra.mxu0 0.0
    %1779 = vmatprep.subr.mxu0 0.0
    %1780 = vmatpush1.msra.mxu0 0.0
    %1781 = vmatprep.subr.mxu0 0.0
    %1782 = vmatpush1.msra.mxu0 0.0
    %1783 = vmatprep.subr.mxu0 0.0
    %1784 = vmatpush1.msra.mxu0 0.0
    %1785 = vmatprep.subr.mxu0 0.0
    %1786 = vmatpush1.msra.mxu0 0.0
    %1787 = vmatprep.subr.mxu0 0.0
    %1788 = vmatpush1.msra.mxu0 0.0
    %1789 = vmatprep.subr.mxu0 0.0
    %1790 = vmatpush1.msra.mxu0 0.0
    %1791 = vmatprep.subr.mxu0 0.0
    %1792 = vmatpush1.msra.mxu0 0.0
    %1793 = vmatprep.subr.mxu0 0.0
    %1794 = vmatpush1.msra.mxu0 0.0
    %1795 = vmatprep.subr.mxu0 0.0
    %1796 = vmatpush1.msra.mxu0 0.0
    %1797 = vmatprep.subr.mxu0 0.0
    %1798 = vmatpush1.msra.mxu0 0.0
    %1799 = vmatprep.subr.mxu0 0.0
    %1800 = vmatpush1.msra.mxu0 0.0
    %1801 = vmatprep.subr.mxu0 0.0
    %1802 = vmatpush1.msra.mxu0 0.0
    %1803 = vmatprep.mubr.f32.mxu0 0.0
    %1804 = vmatmul.mubr.f32.gmra.mrb[0].mxu0 %v60
    %v1805 = vpop.f32.mrb[0].mxu0
    %v1806 = vadd.f32 %v33, %v1805
    %v1807 = vpop.f32.mrb[0].mxu0
    %1808 = vmatprep.mubr.f32.mxu0 0.0
    %1809 = vmatmul.mubr.f32.gmra.mrb[0].mxu0 %v63
    %v1810 = vpop.f32.mrb[0].mxu0
    %v1811 = vadd.f32 %v38, %v1810
    %v1812 = vpop.f32.mrb[0].mxu0
    %1813 = vmatprep.mubr.f32.mxu0 0.0
    %1814 = vmatmul.mubr.f32.gmra.mrb[0].mxu0 %v66
    %v1815 = vpop.f32.mrb[0].mxu0
    %v1816 = vadd.f32 %v43, %v1815
    %v1817 = vpop.f32.mrb[0].mxu0
    %1818 = vmatprep.mubr.f32.mxu0 0.0
    %1819 = vmatmul.mubr.f32.gmra.mrb[0].mxu0 %v69
    %v1820 = vpop.f32.mrb[0].mxu0
    %v1821 = vadd.f32 %v48, %v1820
    %v1822 = vpop.f32.mrb[0].mxu0
    %1823 = vdwg.mxu0
    %v1824 = vtanh.pop %v1806
    %v1825 = vtanh.pop %v1811
    %v1826 = vtanh.pop %v1816
    %v1827 = vtanh.pop %v1821
    %1828 = vmatprep.subr.mxu0 0.0
    %1829 = vmatpush1.msra.mxu0 %v1824
    %1830 = vmatprep.subr.mxu0 0.0
    %1831 = vmatpush1.msra.mxu0 %v1825
    %1832 = vmatprep.subr.mxu0 0.0
    %1833 = vmatpush1.msra.mxu0 %v1826
    %1834 = vmatprep.subr.mxu0 0.0
    %1835 = vmatpush1.msra.mxu0 %v1827
    %1836 = vmatprep.subr.mxu0 0.0
    %1837 = vmatpush1.msra.mxu0 0.0
    %1838 = vmatprep.subr.mxu0 0.0
    %1839 = vmatpush1.msra.mxu0 0.0
    %1840 = vmatprep.subr.mxu0 0.0
    %1841 = vmatpush1.msra.mxu0 0.0
    %1842 = vmatprep.subr.mxu0 0.0
    %1843 = vmatpush1.msra.mxu0 0.0
    %1844 = vmatprep.subr.mxu0 0.0
    %1845 = vmatpush1.msra.mxu0 0.0
    %1846 = vmatprep.subr.mxu0 0.0
    %1847 = vmatpush1.msra.mxu0 0.0
    %1848 = vmatprep.subr.mxu0 0.0
    %1849 = vmatpush1.msra.mxu0 0.0
    %1850 = vmatprep.subr.mxu0 0.0
    %1851 = vmatpush1.msra.mxu0 0.0
    %1852 = vmatprep.subr.mxu0 0.0
    %1853 = vmatpush1.msra.mxu0 0.0
    %1854 = vmatprep.subr.mxu0 0.0
    %1855 = vmatpush1.msra.mxu0 0.0
    %1856 = vmatprep.subr.mxu0 0.0
    %1857 = vmatpush1.msra.mxu0 0.0
    %1858 = vmatprep.subr.mxu0 0.0
    %1859 = vmatpush1.msra.mxu0 0.0
    %1860 = vmatprep.subr.mxu0 0.0
    %1861 = vmatpush1.msra.mxu0 0.0
    %1862 = vmatprep.subr.mxu0 0.0
    %1863 = vmatpush1.msra.mxu0 0.0
    %1864 = vmatprep.subr.mxu0 0.0
    %1865 = vmatpush1.msra.mxu0 0.0
    %1866 = vmatprep.subr.mxu0 0.0
    %1867 = vmatpush1.msra.mxu0 0.0
    %1868 = vmatprep.subr.mxu0 0.0
    %1869 = vmatpush1.msra.mxu0 0.0
    %1870 = vmatprep.subr.mxu0 0.0
    %1871 = vmatpush1.msra.mxu0 0.0
    %1872 = vmatprep.subr.mxu0 0.0
    %1873 = vmatpush1.msra.mxu0 0.0
    %1874 = vmatprep.subr.mxu0 0.0
    %1875 = vmatpush1.msra.mxu0 0.0
    %1876 = vmatprep.subr.mxu0 0.0
    %1877 = vmatpush1.msra.mxu0 0.0
    %1878 = vmatprep.subr.mxu0 0.0
    %1879 = vmatpush1.msra.mxu0 0.0
    %1880 = vmatprep.subr.mxu0 0.0
    %1881 = vmatpush1.msra.mxu0 0.0
    %1882 = vmatprep.subr.mxu0 0.0
    %1883 = vmatpush1.msra.mxu0 0.0
    %1884 = vmatprep.subr.mxu0 0.0
    %1885 = vmatpush1.msra.mxu0 0.0
    %1886 = vmatprep.subr.mxu0 0.0
    %1887 = vmatpush1.msra.mxu0 0.0
    %1888 = vmatprep.subr.mxu0 0.0
    %1889 = vmatpush1.msra.mxu0 0.0
    %1890 = vmatprep.subr.mxu0 0.0
    %1891 = vmatpush1.msra.mxu0 0.0
    %1892 = vmatprep.mubr.f32.mxu0 0.0
    %1893 = vmatmul.mubr.f32.gmra.mrb[0].mxu0 %v166
    %v1894 = vpop.f32.mrb[0].mxu0
    %v1895 = vadd.f32 %v54, %v1894
    %v1896 = vpop.f32.mrb[0].mxu0
    %1897 = vdwg.mxu0
    %v1898 = vsub.f32 %v1565, %v1729
    %v1899 = vadd.f32 %v1898, %v1895
    %v1900 = vmul.f32 %v1899, 0.01
    %v1901 = vadd.f32 %v1404, %v1900
    %v1903 = vsel %vm71, %v1901, 0
    %1905 = vmatprep.subr.mxu0 0.0
    %1906 = vmatpush1.msra.mxu0 %v1903
    %1907 = vmatprep.subr.mxu0 0.0
    %1908 = vmatpush1.msra.mxu0 0.0
    %1909 = vmatprep.subr.mxu0 0.0
    %1910 = vmatpush1.msra.mxu0 0.0
    %1911 = vmatprep.subr.mxu0 0.0
    %1912 = vmatpush1.msra.mxu0 0.0
    %1913 = vmatprep.subr.mxu0 0.0
    %1914 = vmatpush1.msra.mxu0 0.0
    %1915 = vmatprep.subr.mxu0 0.0
    %1916 = vmatpush1.msra.mxu0 0.0
    %1917 = vmatprep.subr.mxu0 0.0
    %1918 = vmatpush1.msra.mxu0 0.0
    %1919 = vmatprep.subr.mxu0 0.0
    %1920 = vmatpush1.msra.mxu0 0.0
    %1921 = vmatprep.subr.mxu0 0.0
    %1922 = vmatpush1.msra.mxu0 0.0
    %1923 = vmatprep.subr.mxu0 0.0
    %1924 = vmatpush1.msra.mxu0 0.0
    %1925 = vmatprep.subr.mxu0 0.0
    %1926 = vmatpush1.msra.mxu0 0.0
    %1927 = vmatprep.subr.mxu0 0.0
    %1928 = vmatpush1.msra.mxu0 0.0
    %1929 = vmatprep.subr.mxu0 0.0
    %1930 = vmatpush1.msra.mxu0 0.0
    %1931 = vmatprep.subr.mxu0 0.0
    %1932 = vmatpush1.msra.mxu0 0.0
    %1933 = vmatprep.subr.mxu0 0.0
    %1934 = vmatpush1.msra.mxu0 0.0
    %1935 = vmatprep.subr.mxu0 0.0
    %1936 = vmatpush1.msra.mxu0 0.0
    %1937 = vmatprep.subr.mxu0 0.0
    %1938 = vmatpush1.msra.mxu0 0.0
    %1939 = vmatprep.subr.mxu0 0.0
    %1940 = vmatpush1.msra.mxu0 0.0
    %1941 = vmatprep.subr.mxu0 0.0
    %1942 = vmatpush1.msra.mxu0 0.0
    %1943 = vmatprep.subr.mxu0 0.0
    %1944 = vmatpush1.msra.mxu0 0.0
    %1945 = vmatprep.subr.mxu0 0.0
    %1946 = vmatpush1.msra.mxu0 0.0
    %1947 = vmatprep.subr.mxu0 0.0
    %1948 = vmatpush1.msra.mxu0 0.0
    %1949 = vmatprep.subr.mxu0 0.0
    %1950 = vmatpush1.msra.mxu0 0.0
    %1951 = vmatprep.subr.mxu0 0.0
    %1952 = vmatpush1.msra.mxu0 0.0
    %1953 = vmatprep.subr.mxu0 0.0
    %1954 = vmatpush1.msra.mxu0 0.0
    %1955 = vmatprep.subr.mxu0 0.0
    %1956 = vmatpush1.msra.mxu0 0.0
    %1957 = vmatprep.subr.mxu0 0.0
    %1958 = vmatpush1.msra.mxu0 0.0
    %1959 = vmatprep.subr.mxu0 0.0
    %1960 = vmatpush1.msra.mxu0 0.0
    %1961 = vmatprep.subr.mxu0 0.0
    %1962 = vmatpush1.msra.mxu0 0.0
    %1963 = vmatprep.subr.mxu0 0.0
    %1964 = vmatpush1.msra.mxu0 0.0
    %1965 = vmatprep.subr.mxu0 0.0
    %1966 = vmatpush1.msra.mxu0 0.0
    %1967 = vmatprep.subr.mxu0 0.0
    %1968 = vmatpush1.msra.mxu0 0.0
    %1969 = vmatprep.mubr.f32.mxu0 0.0
    %1970 = vmatmul.mubr.f32.gmra.mrb[0].mxu0 %v60
    %v1971 = vpop.f32.mrb[0].mxu0
    %v1972 = vadd.f32 %v33, %v1971
    %v1973 = vpop.f32.mrb[0].mxu0
    %1974 = vmatprep.mubr.f32.mxu0 0.0
    %1975 = vmatmul.mubr.f32.gmra.mrb[0].mxu0 %v63
    %v1976 = vpop.f32.mrb[0].mxu0
    %v1977 = vadd.f32 %v38, %v1976
    %v1978 = vpop.f32.mrb[0].mxu0
    %1979 = vmatprep.mubr.f32.mxu0 0.0
    %1980 = vmatmul.mubr.f32.gmra.mrb[0].mxu0 %v66
    %v1981 = vpop.f32.mrb[0].mxu0
    %v1982 = vadd.f32 %v43, %v1981
    %v1983 = vpop.f32.mrb[0].mxu0
    %1984 = vmatprep.mubr.f32.mxu0 0.0
    %1985 = vmatmul.mubr.f32.gmra.mrb[0].mxu0 %v69
    %v1986 = vpop.f32.mrb[0].mxu0
    %v1987 = vadd.f32 %v48, %v1986
    %v1988 = vpop.f32.mrb[0].mxu0
    %1989 = vdwg.mxu0
    %v1990 = vtanh.pop %v1972
    %v1991 = vtanh.pop %v1977
    %v1992 = vtanh.pop %v1982
    %v1993 = vtanh.pop %v1987
    %1994 = vmatprep.subr.mxu0 0.0
    %1995 = vmatpush1.msra.mxu0 %v1990
    %1996 = vmatprep.subr.mxu0 0.0
    %1997 = vmatpush1.msra.mxu0 %v1991
    %1998 = vmatprep.subr.mxu0 0.0
    %1999 = vmatpush1.msra.mxu0 %v1992
    %2000 = vmatprep.subr.mxu0 0.0
    %2001 = vmatpush1.msra.mxu0 %v1993
    %2002 = vmatprep.subr.mxu0 0.0
    %2003 = vmatpush1.msra.mxu0 0.0
    %2004 = vmatprep.subr.mxu0 0.0
    %2005 = vmatpush1.msra.mxu0 0.0
    %2006 = vmatprep.subr.mxu0 0.0
    %2007 = vmatpush1.msra.mxu0 0.0
    %2008 = vmatprep.subr.mxu0 0.0
    %2009 = vmatpush1.msra.mxu0 0.0
    %2010 = vmatprep.subr.mxu0 0.0
    %2011 = vmatpush1.msra.mxu0 0.0
    %2012 = vmatprep.subr.mxu0 0.0
    %2013 = vmatpush1.msra.mxu0 0.0
    %2014 = vmatprep.subr.mxu0 0.0
    %2015 = vmatpush1.msra.mxu0 0.0
    %2016 = vmatprep.subr.mxu0 0.0
    %2017 = vmatpush1.msra.mxu0 0.0
    %2018 = vmatprep.subr.mxu0 0.0
    %2019 = vmatpush1.msra.mxu0 0.0
    %2020 = vmatprep.subr.mxu0 0.0
    %2021 = vmatpush1.msra.mxu0 0.0
    %2022 = vmatprep.subr.mxu0 0.0
    %2023 = vmatpush1.msra.mxu0 0.0
    %2024 = vmatprep.subr.mxu0 0.0
    %2025 = vmatpush1.msra.mxu0 0.0
    %2026 = vmatprep.subr.mxu0 0.0
    %2027 = vmatpush1.msra.mxu0 0.0
    %2028 = vmatprep.subr.mxu0 0.0
    %2029 = vmatpush1.msra.mxu0 0.0
    %2030 = vmatprep.subr.mxu0 0.0
    %2031 = vmatpush1.msra.mxu0 0.0
    %2032 = vmatprep.subr.mxu0 0.0
    %2033 = vmatpush1.msra.mxu0 0.0
    %2034 = vmatprep.subr.mxu0 0.0
    %2035 = vmatpush1.msra.mxu0 0.0
    %2036 = vmatprep.subr.mxu0 0.0
    %2037 = vmatpush1.msra.mxu0 0.0
    %2038 = vmatprep.subr.mxu0 0.0
    %2039 = vmatpush1.msra.mxu0 0.0
    %2040 = vmatprep.subr.mxu0 0.0
    %2041 = vmatpush1.msra.mxu0 0.0
    %2042 = vmatprep.subr.mxu0 0.0
    %2043 = vmatpush1.msra.mxu0 0.0
    %2044 = vmatprep.subr.mxu0 0.0
    %2045 = vmatpush1.msra.mxu0 0.0
    %2046 = vmatprep.subr.mxu0 0.0
    %2047 = vmatpush1.msra.mxu0 0.0
    %2048 = vmatprep.subr.mxu0 0.0
    %2049 = vmatpush1.msra.mxu0 0.0
    %2050 = vmatprep.subr.mxu0 0.0
    %2051 = vmatpush1.msra.mxu0 0.0
    %2052 = vmatprep.subr.mxu0 0.0
    %2053 = vmatpush1.msra.mxu0 0.0
    %2054 = vmatprep.subr.mxu0 0.0
    %2055 = vmatpush1.msra.mxu0 0.0
    %2056 = vmatprep.subr.mxu0 0.0
    %2057 = vmatpush1.msra.mxu0 0.0
    %2058 = vmatprep.mubr.f32.mxu0 0.0
    %2059 = vmatmul.mubr.f32.gmra.mrb[0].mxu0 %v166
    %v2060 = vpop.f32.mrb[0].mxu0
    %v2061 = vadd.f32 %v54, %v2060
    %v2062 = vpop.f32.mrb[0].mxu0
    %2063 = vdwg.mxu0
    %v2064 = vadd.f32 %v1729, %v1895
    %v2065 = vmul.f32 %v2064, 3.0
    %v2066 = vadd.f32 %v1565, %v2065
    %v2067 = vadd.f32 %v2066, %v2061
    %v2068 = vmul.f32 %v2067, 0.00125
    %v2069 = vadd.f32 %v1404, %v2068
    %2070 = vst [vmem:[#allocation2 + $0x9] sm:$0x7] %v2069
    %v2072 = vsel %vm71, %v2069, 0
    %2074 = vmatprep.subr.mxu0 0.0
    %2075 = vmatpush1.msra.mxu0 %v2072
    %2076 = vmatprep.subr.mxu0 0.0
    %2077 = vmatpush1.msra.mxu0 0.0
    %2078 = vmatprep.subr.mxu0 0.0
    %2079 = vmatpush1.msra.mxu0 0.0
    %2080 = vmatprep.subr.mxu0 0.0
    %2081 = vmatpush1.msra.mxu0 0.0
    %2082 = vmatprep.subr.mxu0 0.0
    %2083 = vmatpush1.msra.mxu0 0.0
    %2084 = vmatprep.subr.mxu0 0.0
    %2085 = vmatpush1.msra.mxu0 0.0
    %2086 = vmatprep.subr.mxu0 0.0
    %2087 = vmatpush1.msra.mxu0 0.0
    %2088 = vmatprep.subr.mxu0 0.0
    %2089 = vmatpush1.msra.mxu0 0.0
    %2090 = vmatprep.subr.mxu0 0.0
    %2091 = vmatpush1.msra.mxu0 0.0
    %2092 = vmatprep.subr.mxu0 0.0
    %2093 = vmatpush1.msra.mxu0 0.0
    %2094 = vmatprep.subr.mxu0 0.0
    %2095 = vmatpush1.msra.mxu0 0.0
    %2096 = vmatprep.subr.mxu0 0.0
    %2097 = vmatpush1.msra.mxu0 0.0
    %2098 = vmatprep.subr.mxu0 0.0
    %2099 = vmatpush1.msra.mxu0 0.0
    %2100 = vmatprep.subr.mxu0 0.0
    %2101 = vmatpush1.msra.mxu0 0.0
    %2102 = vmatprep.subr.mxu0 0.0
    %2103 = vmatpush1.msra.mxu0 0.0
    %2104 = vmatprep.subr.mxu0 0.0
    %2105 = vmatpush1.msra.mxu0 0.0
    %2106 = vmatprep.subr.mxu0 0.0
    %2107 = vmatpush1.msra.mxu0 0.0
    %2108 = vmatprep.subr.mxu0 0.0
    %2109 = vmatpush1.msra.mxu0 0.0
    %2110 = vmatprep.subr.mxu0 0.0
    %2111 = vmatpush1.msra.mxu0 0.0
    %2112 = vmatprep.subr.mxu0 0.0
    %2113 = vmatpush1.msra.mxu0 0.0
    %2114 = vmatprep.subr.mxu0 0.0
    %2115 = vmatpush1.msra.mxu0 0.0
    %2116 = vmatprep.subr.mxu0 0.0
    %2117 = vmatpush1.msra.mxu0 0.0
    %2118 = vmatprep.subr.mxu0 0.0
    %2119 = vmatpush1.msra.mxu0 0.0
    %2120 = vmatprep.subr.mxu0 0.0
    %2121 = vmatpush1.msra.mxu0 0.0
    %2122 = vmatprep.subr.mxu0 0.0
    %2123 = vmatpush1.msra.mxu0 0.0
    %2124 = vmatprep.subr.mxu0 0.0
    %2125 = vmatpush1.msra.mxu0 0.0
    %2126 = vmatprep.subr.mxu0 0.0
    %2127 = vmatpush1.msra.mxu0 0.0
    %2128 = vmatprep.subr.mxu0 0.0
    %2129 = vmatpush1.msra.mxu0 0.0
    %2130 = vmatprep.subr.mxu0 0.0
    %2131 = vmatpush1.msra.mxu0 0.0
    %2132 = vmatprep.subr.mxu0 0.0
    %2133 = vmatpush1.msra.mxu0 0.0
    %2134 = vmatprep.subr.mxu0 0.0
    %2135 = vmatpush1.msra.mxu0 0.0
    %2136 = vmatprep.subr.mxu0 0.0
    %2137 = vmatpush1.msra.mxu0 0.0
    %2138 = vmatprep.mubr.f32.mxu0 0.0
    %2139 = vmatmul.mubr.f32.gmra.mrb[0].mxu0 %v60
    %v2140 = vpop.f32.mrb[0].mxu0
    %v2141 = vadd.f32 %v33, %v2140
    %v2142 = vpop.f32.mrb[0].mxu0
    %2143 = vmatprep.mubr.f32.mxu0 0.0
    %2144 = vmatmul.mubr.f32.gmra.mrb[0].mxu0 %v63
    %v2145 = vpop.f32.mrb[0].mxu0
    %v2146 = vadd.f32 %v38, %v2145
    %v2147 = vpop.f32.mrb[0].mxu0
    %2148 = vmatprep.mubr.f32.mxu0 0.0
    %2149 = vmatmul.mubr.f32.gmra.mrb[0].mxu0 %v66
    %v2150 = vpop.f32.mrb[0].mxu0
    %v2151 = vadd.f32 %v43, %v2150
    %v2152 = vpop.f32.mrb[0].mxu0
    %2153 = vmatprep.mubr.f32.mxu0 0.0
    %2154 = vmatmul.mubr.f32.gmra.mrb[0].mxu0 %v69
    %v2155 = vpop.f32.mrb[0].mxu0
    %v2156 = vadd.f32 %v48, %v2155
    %v2157 = vpop.f32.mrb[0].mxu0
    %2158 = vdwg.mxu0
    %v2159 = vtanh.pop %v2141
    %v2160 = vtanh.pop %v2146
    %v2161 = vtanh.pop %v2151
    %v2162 = vtanh.pop %v2156
    %2163 = vmatprep.subr.mxu0 0.0
    %2164 = vmatpush1.msra.mxu0 %v2159
    %2165 = vmatprep.subr.mxu0 0.0
    %2166 = vmatpush1.msra.mxu0 %v2160
    %2167 = vmatprep.subr.mxu0 0.0
    %2168 = vmatpush1.msra.mxu0 %v2161
    %2169 = vmatprep.subr.mxu0 0.0
    %2170 = vmatpush1.msra.mxu0 %v2162
    %2171 = vmatprep.subr.mxu0 0.0
    %2172 = vmatpush1.msra.mxu0 0.0
    %2173 = vmatprep.subr.mxu0 0.0
    %2174 = vmatpush1.msra.mxu0 0.0
    %2175 = vmatprep.subr.mxu0 0.0
    %2176 = vmatpush1.msra.mxu0 0.0
    %2177 = vmatprep.subr.mxu0 0.0
    %2178 = vmatpush1.msra.mxu0 0.0
    %2179 = vmatprep.subr.mxu0 0.0
    %2180 = vmatpush1.msra.mxu0 0.0
    %2181 = vmatprep.subr.mxu0 0.0
    %2182 = vmatpush1.msra.mxu0 0.0
    %2183 = vmatprep.subr.mxu0 0.0
    %2184 = vmatpush1.msra.mxu0 0.0
    %2185 = vmatprep.subr.mxu0 0.0
    %2186 = vmatpush1.msra.mxu0 0.0
    %2187 = vmatprep.subr.mxu0 0.0
    %2188 = vmatpush1.msra.mxu0 0.0
    %2189 = vmatprep.subr.mxu0 0.0
    %2190 = vmatpush1.msra.mxu0 0.0
    %2191 = vmatprep.subr.mxu0 0.0
    %2192 = vmatpush1.msra.mxu0 0.0
    %2193 = vmatprep.subr.mxu0 0.0
    %2194 = vmatpush1.msra.mxu0 0.0
    %2195 = vmatprep.subr.mxu0 0.0
    %2196 = vmatpush1.msra.mxu0 0.0
    %2197 = vmatprep.subr.mxu0 0.0
    %2198 = vmatpush1.msra.mxu0 0.0
    %2199 = vmatprep.subr.mxu0 0.0
    %2200 = vmatpush1.msra.mxu0 0.0
    %2201 = vmatprep.subr.mxu0 0.0
    %2202 = vmatpush1.msra.mxu0 0.0
    %2203 = vmatprep.subr.mxu0 0.0
    %2204 = vmatpush1.msra.mxu0 0.0
    %2205 = vmatprep.subr.mxu0 0.0
    %2206 = vmatpush1.msra.mxu0 0.0
    %2207 = vmatprep.subr.mxu0 0.0
    %2208 = vmatpush1.msra.mxu0 0.0
    %2209 = vmatprep.subr.mxu0 0.0
    %2210 = vmatpush1.msra.mxu0 0.0
    %2211 = vmatprep.subr.mxu0 0.0
    %2212 = vmatpush1.msra.mxu0 0.0
    %2213 = vmatprep.subr.mxu0 0.0
    %2214 = vmatpush1.msra.mxu0 0.0
    %2215 = vmatprep.subr.mxu0 0.0
    %2216 = vmatpush1.msra.mxu0 0.0
    %2217 = vmatprep.subr.mxu0 0.0
    %2218 = vmatpush1.msra.mxu0 0.0
    %2219 = vmatprep.subr.mxu0 0.0
    %2220 = vmatpush1.msra.mxu0 0.0
    %2221 = vmatprep.subr.mxu0 0.0
    %2222 = vmatpush1.msra.mxu0 0.0
    %2223 = vmatprep.subr.mxu0 0.0
    %2224 = vmatpush1.msra.mxu0 0.0
    %2225 = vmatprep.subr.mxu0 0.0
    %2226 = vmatpush1.msra.mxu0 0.0
    %2227 = vmatprep.mubr.f32.mxu0 0.0
    %2228 = vmatmul.mubr.f32.gmra.mrb[0].mxu0 %v166
    %v2229 = vpop.f32.mrb[0].mxu0
    %v2230 = vadd.f32 %v54, %v2229
    %v2231 = vpop.f32.mrb[0].mxu0
    %2232 = vdwg.mxu0
    %v2233 = vmul.f32 %v2230, 0.0033333334
    %v2234 = vadd.f32 %v2069, %v2233
    %v2236 = vsel %vm71, %v2234, 0
    %2238 = vmatprep.subr.mxu0 0.0
    %2239 = vmatpush1.msra.mxu0 %v2236
    %2240 = vmatprep.subr.mxu0 0.0
    %2241 = vmatpush1.msra.mxu0 0.0
    %2242 = vmatprep.subr.mxu0 0.0
    %2243 = vmatpush1.msra.mxu0 0.0
    %2244 = vmatprep.subr.mxu0 0.0
    %2245 = vmatpush1.msra.mxu0 0.0
    %2246 = vmatprep.subr.mxu0 0.0
    %2247 = vmatpush1.msra.mxu0 0.0
    %2248 = vmatprep.subr.mxu0 0.0
    %2249 = vmatpush1.msra.mxu0 0.0
    %2250 = vmatprep.subr.mxu0 0.0
    %2251 = vmatpush1.msra.mxu0 0.0
    %2252 = vmatprep.subr.mxu0 0.0
    %2253 = vmatpush1.msra.mxu0 0.0
    %2254 = vmatprep.subr.mxu0 0.0
    %2255 = vmatpush1.msra.mxu0 0.0
    %2256 = vmatprep.subr.mxu0 0.0
    %2257 = vmatpush1.msra.mxu0 0.0
    %2258 = vmatprep.subr.mxu0 0.0
    %2259 = vmatpush1.msra.mxu0 0.0
    %2260 = vmatprep.subr.mxu0 0.0
    %2261 = vmatpush1.msra.mxu0 0.0
    %2262 = vmatprep.subr.mxu0 0.0
    %2263 = vmatpush1.msra.mxu0 0.0
    %2264 = vmatprep.subr.mxu0 0.0
    %2265 = vmatpush1.msra.mxu0 0.0
    %2266 = vmatprep.subr.mxu0 0.0
    %2267 = vmatpush1.msra.mxu0 0.0
    %2268 = vmatprep.subr.mxu0 0.0
    %2269 = vmatpush1.msra.mxu0 0.0
    %2270 = vmatprep.subr.mxu0 0.0
    %2271 = vmatpush1.msra.mxu0 0.0
    %2272 = vmatprep.subr.mxu0 0.0
    %2273 = vmatpush1.msra.mxu0 0.0
    %2274 = vmatprep.subr.mxu0 0.0
    %2275 = vmatpush1.msra.mxu0 0.0
    %2276 = vmatprep.subr.mxu0 0.0
    %2277 = vmatpush1.msra.mxu0 0.0
    %2278 = vmatprep.subr.mxu0 0.0
    %2279 = vmatpush1.msra.mxu0 0.0
    %2280 = vmatprep.subr.mxu0 0.0
    %2281 = vmatpush1.msra.mxu0 0.0
    %2282 = vmatprep.subr.mxu0 0.0
    %2283 = vmatpush1.msra.mxu0 0.0
    %2284 = vmatprep.subr.mxu0 0.0
    %2285 = vmatpush1.msra.mxu0 0.0
    %2286 = vmatprep.subr.mxu0 0.0
    %2287 = vmatpush1.msra.mxu0 0.0
    %2288 = vmatprep.subr.mxu0 0.0
    %2289 = vmatpush1.msra.mxu0 0.0
    %2290 = vmatprep.subr.mxu0 0.0
    %2291 = vmatpush1.msra.mxu0 0.0
    %2292 = vmatprep.subr.mxu0 0.0
    %2293 = vmatpush1.msra.mxu0 0.0
    %2294 = vmatprep.subr.mxu0 0.0
    %2295 = vmatpush1.msra.mxu0 0.0
    %2296 = vmatprep.subr.mxu0 0.0
    %2297 = vmatpush1.msra.mxu0 0.0
    %2298 = vmatprep.subr.mxu0 0.0
    %2299 = vmatpush1.msra.mxu0 0.0
    %2300 = vmatprep.subr.mxu0 0.0
    %2301 = vmatpush1.msra.mxu0 0.0
    %2302 = vmatprep.mubr.f32.mxu0 0.0
    %2303 = vmatmul.mubr.f32.gmra.mrb[0].mxu0 %v60
    %v2304 = vpop.f32.mrb[0].mxu0
    %v2305 = vadd.f32 %v33, %v2304
    %v2306 = vpop.f32.mrb[0].mxu0
    %2307 = vmatprep.mubr.f32.mxu0 0.0
    %2308 = vmatmul.mubr.f32.gmra.mrb[0].mxu0 %v63
    %v2309 = vpop.f32.mrb[0].mxu0
    %v2310 = vadd.f32 %v38, %v2309
    %v2311 = vpop.f32.mrb[0].mxu0
    %2312 = vmatprep.mubr.f32.mxu0 0.0
    %2313 = vmatmul.mubr.f32.gmra.mrb[0].mxu0 %v66
    %v2314 = vpop.f32.mrb[0].mxu0
    %v2315 = vadd.f32 %v43, %v2314
    %v2316 = vpop.f32.mrb[0].mxu0
    %2317 = vmatprep.mubr.f32.mxu0 0.0
    %2318 = vmatmul.mubr.f32.gmra.mrb[0].mxu0 %v69
    %v2319 = vpop.f32.mrb[0].mxu0
    %v2320 = vadd.f32 %v48, %v2319
    %v2321 = vpop.f32.mrb[0].mxu0
    %2322 = vdwg.mxu0
    %v2323 = vtanh.pop %v2305
    %v2324 = vtanh.pop %v2310
    %v2325 = vtanh.pop %v2315
    %v2326 = vtanh.pop %v2320
    %2327 = vmatprep.subr.mxu0 0.0
    %2328 = vmatpush1.msra.mxu0 %v2323
    %2329 = vmatprep.subr.mxu0 0.0
    %2330 = vmatpush1.msra.mxu0 %v2324
    %2331 = vmatprep.subr.mxu0 0.0
    %2332 = vmatpush1.msra.mxu0 %v2325
    %2333 = vmatprep.subr.mxu0 0.0
    %2334 = vmatpush1.msra.mxu0 %v2326
    %2335 = vmatprep.subr.mxu0 0.0
    %2336 = vmatpush1.msra.mxu0 0.0
    %2337 = vmatprep.subr.mxu0 0.0
    %2338 = vmatpush1.msra.mxu0 0.0
    %2339 = vmatprep.subr.mxu0 0.0
    %2340 = vmatpush1.msra.mxu0 0.0
    %2341 = vmatprep.subr.mxu0 0.0
    %2342 = vmatpush1.msra.mxu0 0.0
    %2343 = vmatprep.subr.mxu0 0.0
    %2344 = vmatpush1.msra.mxu0 0.0
    %2345 = vmatprep.subr.mxu0 0.0
    %2346 = vmatpush1.msra.mxu0 0.0
    %2347 = vmatprep.subr.mxu0 0.0
    %2348 = vmatpush1.msra.mxu0 0.0
    %2349 = vmatprep.subr.mxu0 0.0
    %2350 = vmatpush1.msra.mxu0 0.0
    %2351 = vmatprep.subr.mxu0 0.0
    %2352 = vmatpush1.msra.mxu0 0.0
    %2353 = vmatprep.subr.mxu0 0.0
    %2354 = vmatpush1.msra.mxu0 0.0
    %2355 = vmatprep.subr.mxu0 0.0
    %2356 = vmatpush1.msra.mxu0 0.0
    %2357 = vmatprep.subr.mxu0 0.0
    %2358 = vmatpush1.msra.mxu0 0.0
    %2359 = vmatprep.subr.mxu0 0.0
    %2360 = vmatpush1.msra.mxu0 0.0
    %2361 = vmatprep.subr.mxu0 0.0
    %2362 = vmatpush1.msra.mxu0 0.0
    %2363 = vmatprep.subr.mxu0 0.0
    %2364 = vmatpush1.msra.mxu0 0.0
    %2365 = vmatprep.subr.mxu0 0.0
    %2366 = vmatpush1.msra.mxu0 0.0
    %2367 = vmatprep.subr.mxu0 0.0
    %2368 = vmatpush1.msra.mxu0 0.0
    %2369 = vmatprep.subr.mxu0 0.0
    %2370 = vmatpush1.msra.mxu0 0.0
    %2371 = vmatprep.subr.mxu0 0.0
    %2372 = vmatpush1.msra.mxu0 0.0
    %2373 = vmatprep.subr.mxu0 0.0
    %2374 = vmatpush1.msra.mxu0 0.0
    %2375 = vmatprep.subr.mxu0 0.0
    %2376 = vmatpush1.msra.mxu0 0.0
    %2377 = vmatprep.subr.mxu0 0.0
    %2378 = vmatpush1.msra.mxu0 0.0
    %2379 = vmatprep.subr.mxu0 0.0
    %2380 = vmatpush1.msra.mxu0 0.0
    %2381 = vmatprep.subr.mxu0 0.0
    %2382 = vmatpush1.msra.mxu0 0.0
    %2383 = vmatprep.subr.mxu0 0.0
    %2384 = vmatpush1.msra.mxu0 0.0
    %2385 = vmatprep.subr.mxu0 0.0
    %2386 = vmatpush1.msra.mxu0 0.0
    %2387 = vmatprep.subr.mxu0 0.0
    %2388 = vmatpush1.msra.mxu0 0.0
    %2389 = vmatprep.subr.mxu0 0.0
    %2390 = vmatpush1.msra.mxu0 0.0
    %2391 = vmatprep.mubr.f32.mxu0 0.0
    %2392 = vmatmul.mubr.f32.gmra.mrb[0].mxu0 %v166
    %v2393 = vpop.f32.mrb[0].mxu0
    %v2394 = vadd.f32 %v54, %v2393
    %v2395 = vpop.f32.mrb[0].mxu0
    %2396 = vdwg.mxu0
    %v2397 = vmul.f32 %v2230, 0.33333334
    %v2398 = vsub.f32 %v2394, %v2397
    %v2399 = vmul.f32 %v2398, 0.01
    %v2400 = vadd.f32 %v2069, %v2399
    %v2402 = vsel %vm71, %v2400, 0
    %2404 = vmatprep.subr.mxu0 0.0
    %2405 = vmatpush1.msra.mxu0 %v2402
    %2406 = vmatprep.subr.mxu0 0.0
    %2407 = vmatpush1.msra.mxu0 0.0
    %2408 = vmatprep.subr.mxu0 0.0
    %2409 = vmatpush1.msra.mxu0 0.0
    %2410 = vmatprep.subr.mxu0 0.0
    %2411 = vmatpush1.msra.mxu0 0.0
    %2412 = vmatprep.subr.mxu0 0.0
    %2413 = vmatpush1.msra.mxu0 0.0
    %2414 = vmatprep.subr.mxu0 0.0
    %2415 = vmatpush1.msra.mxu0 0.0
    %2416 = vmatprep.subr.mxu0 0.0
    %2417 = vmatpush1.msra.mxu0 0.0
    %2418 = vmatprep.subr.mxu0 0.0
    %2419 = vmatpush1.msra.mxu0 0.0
    %2420 = vmatprep.subr.mxu0 0.0
    %2421 = vmatpush1.msra.mxu0 0.0
    %2422 = vmatprep.subr.mxu0 0.0
    %2423 = vmatpush1.msra.mxu0 0.0
    %2424 = vmatprep.subr.mxu0 0.0
    %2425 = vmatpush1.msra.mxu0 0.0
    %2426 = vmatprep.subr.mxu0 0.0
    %2427 = vmatpush1.msra.mxu0 0.0
    %2428 = vmatprep.subr.mxu0 0.0
    %2429 = vmatpush1.msra.mxu0 0.0
    %2430 = vmatprep.subr.mxu0 0.0
    %2431 = vmatpush1.msra.mxu0 0.0
    %2432 = vmatprep.subr.mxu0 0.0
    %2433 = vmatpush1.msra.mxu0 0.0
    %2434 = vmatprep.subr.mxu0 0.0
    %2435 = vmatpush1.msra.mxu0 0.0
    %2436 = vmatprep.subr.mxu0 0.0
    %2437 = vmatpush1.msra.mxu0 0.0
    %2438 = vmatprep.subr.mxu0 0.0
    %2439 = vmatpush1.msra.mxu0 0.0
    %2440 = vmatprep.subr.mxu0 0.0
    %2441 = vmatpush1.msra.mxu0 0.0
    %2442 = vmatprep.subr.mxu0 0.0
    %2443 = vmatpush1.msra.mxu0 0.0
    %2444 = vmatprep.subr.mxu0 0.0
    %2445 = vmatpush1.msra.mxu0 0.0
    %2446 = vmatprep.subr.mxu0 0.0
    %2447 = vmatpush1.msra.mxu0 0.0
    %2448 = vmatprep.subr.mxu0 0.0
    %2449 = vmatpush1.msra.mxu0 0.0
    %2450 = vmatprep.subr.mxu0 0.0
    %2451 = vmatpush1.msra.mxu0 0.0
    %2452 = vmatprep.subr.mxu0 0.0
    %2453 = vmatpush1.msra.mxu0 0.0
    %2454 = vmatprep.subr.mxu0 0.0
    %2455 = vmatpush1.msra.mxu0 0.0
    %2456 = vmatprep.subr.mxu0 0.0
    %2457 = vmatpush1.msra.mxu0 0.0
    %2458 = vmatprep.subr.mxu0 0.0
    %2459 = vmatpush1.msra.mxu0 0.0
    %2460 = vmatprep.subr.mxu0 0.0
    %2461 = vmatpush1.msra.mxu0 0.0
    %2462 = vmatprep.subr.mxu0 0.0
    %2463 = vmatpush1.msra.mxu0 0.0
    %2464 = vmatprep.subr.mxu0 0.0
    %2465 = vmatpush1.msra.mxu0 0.0
    %2466 = vmatprep.subr.mxu0 0.0
    %2467 = vmatpush1.msra.mxu0 0.0
    %2468 = vmatprep.mubr.f32.mxu0 0.0
    %2469 = vmatmul.mubr.f32.gmra.mrb[0].mxu0 %v60
    %v2470 = vpop.f32.mrb[0].mxu0
    %v2471 = vadd.f32 %v33, %v2470
    %v2472 = vpop.f32.mrb[0].mxu0
    %2473 = vmatprep.mubr.f32.mxu0 0.0
    %2474 = vmatmul.mubr.f32.gmra.mrb[0].mxu0 %v63
    %v2475 = vpop.f32.mrb[0].mxu0
    %v2476 = vadd.f32 %v38, %v2475
    %v2477 = vpop.f32.mrb[0].mxu0
    %2478 = vmatprep.mubr.f32.mxu0 0.0
    %2479 = vmatmul.mubr.f32.gmra.mrb[0].mxu0 %v66
    %v2480 = vpop.f32.mrb[0].mxu0
    %v2481 = vadd.f32 %v43, %v2480
    %v2482 = vpop.f32.mrb[0].mxu0
    %2483 = vmatprep.mubr.f32.mxu0 0.0
    %2484 = vmatmul.mubr.f32.gmra.mrb[0].mxu0 %v69
    %v2485 = vpop.f32.mrb[0].mxu0
    %v2486 = vadd.f32 %v48, %v2485
    %v2487 = vpop.f32.mrb[0].mxu0
    %2488 = vdwg.mxu0
    %v2489 = vtanh.pop %v2471
    %v2490 = vtanh.pop %v2476
    %v2491 = vtanh.pop %v2481
    %v2492 = vtanh.pop %v2486
    %2493 = vmatprep.subr.mxu0 0.0
    %2494 = vmatpush1.msra.mxu0 %v2489
    %2495 = vmatprep.subr.mxu0 0.0
    %2496 = vmatpush1.msra.mxu0 %v2490
    %2497 = vmatprep.subr.mxu0 0.0
    %2498 = vmatpush1.msra.mxu0 %v2491
    %2499 = vmatprep.subr.mxu0 0.0
    %2500 = vmatpush1.msra.mxu0 %v2492
    %2501 = vmatprep.subr.mxu0 0.0
    %2502 = vmatpush1.msra.mxu0 0.0
    %2503 = vmatprep.subr.mxu0 0.0
    %2504 = vmatpush1.msra.mxu0 0.0
    %2505 = vmatprep.subr.mxu0 0.0
    %2506 = vmatpush1.msra.mxu0 0.0
    %2507 = vmatprep.subr.mxu0 0.0
    %2508 = vmatpush1.msra.mxu0 0.0
    %2509 = vmatprep.subr.mxu0 0.0
    %2510 = vmatpush1.msra.mxu0 0.0
    %2511 = vmatprep.subr.mxu0 0.0
    %2512 = vmatpush1.msra.mxu0 0.0
    %2513 = vmatprep.subr.mxu0 0.0
    %2514 = vmatpush1.msra.mxu0 0.0
    %2515 = vmatprep.subr.mxu0 0.0
    %2516 = vmatpush1.msra.mxu0 0.0
    %2517 = vmatprep.subr.mxu0 0.0
    %2518 = vmatpush1.msra.mxu0 0.0
    %2519 = vmatprep.subr.mxu0 0.0
    %2520 = vmatpush1.msra.mxu0 0.0
    %2521 = vmatprep.subr.mxu0 0.0
    %2522 = vmatpush1.msra.mxu0 0.0
    %2523 = vmatprep.subr.mxu0 0.0
    %2524 = vmatpush1.msra.mxu0 0.0
    %2525 = vmatprep.subr.mxu0 0.0
    %2526 = vmatpush1.msra.mxu0 0.0
    %2527 = vmatprep.subr.mxu0 0.0
    %2528 = vmatpush1.msra.mxu0 0.0
    %2529 = vmatprep.subr.mxu0 0.0
    %2530 = vmatpush1.msra.mxu0 0.0
    %2531 = vmatprep.subr.mxu0 0.0
    %2532 = vmatpush1.msra.mxu0 0.0
    %2533 = vmatprep.subr.mxu0 0.0
    %2534 = vmatpush1.msra.mxu0 0.0
    %2535 = vmatprep.subr.mxu0 0.0
    %2536 = vmatpush1.msra.mxu0 0.0
    %2537 = vmatprep.subr.mxu0 0.0
    %2538 = vmatpush1.msra.mxu0 0.0
    %2539 = vmatprep.subr.mxu0 0.0
    %2540 = vmatpush1.msra.mxu0 0.0
    %2541 = vmatprep.subr.mxu0 0.0
    %2542 = vmatpush1.msra.mxu0 0.0
    %2543 = vmatprep.subr.mxu0 0.0
    %2544 = vmatpush1.msra.mxu0 0.0
    %2545 = vmatprep.subr.mxu0 0.0
    %2546 = vmatpush1.msra.mxu0 0.0
    %2547 = vmatprep.subr.mxu0 0.0
    %2548 = vmatpush1.msra.mxu0 0.0
    %2549 = vmatprep.subr.mxu0 0.0
    %2550 = vmatpush1.msra.mxu0 0.0
    %2551 = vmatprep.subr.mxu0 0.0
    %2552 = vmatpush1.msra.mxu0 0.0
    %2553 = vmatprep.subr.mxu0 0.0
    %2554 = vmatpush1.msra.mxu0 0.0
    %2555 = vmatprep.subr.mxu0 0.0
    %2556 = vmatpush1.msra.mxu0 0.0
    %2557 = vmatprep.mubr.f32.mxu0 0.0
    %2558 = vmatmul.mubr.f32.gmra.mrb[0].mxu0 %v166
    %v2559 = vpop.f32.mrb[0].mxu0
    %v2560 = vadd.f32 %v54, %v2559
    %v2561 = vpop.f32.mrb[0].mxu0
    %2562 = vdwg.mxu0
    %v2563 = vsub.f32 %v2230, %v2394
    %v2564 = vadd.f32 %v2563, %v2560
    %v2565 = vmul.f32 %v2564, 0.01
    %v2566 = vadd.f32 %v2069, %v2565
    %v2568 = vsel %vm71, %v2566, 0
    %2570 = vmatprep.subr.mxu0 0.0
    %2571 = vmatpush1.msra.mxu0 %v2568
    %2572 = vmatprep.subr.mxu0 0.0
    %2573 = vmatpush1.msra.mxu0 0.0
    %2574 = vmatprep.subr.mxu0 0.0
    %2575 = vmatpush1.msra.mxu0 0.0
    %2576 = vmatprep.subr.mxu0 0.0
    %2577 = vmatpush1.msra.mxu0 0.0
    %2578 = vmatprep.subr.mxu0 0.0
    %2579 = vmatpush1.msra.mxu0 0.0
    %2580 = vmatprep.subr.mxu0 0.0
    %2581 = vmatpush1.msra.mxu0 0.0
    %2582 = vmatprep.subr.mxu0 0.0
    %2583 = vmatpush1.msra.mxu0 0.0
    %2584 = vmatprep.subr.mxu0 0.0
    %2585 = vmatpush1.msra.mxu0 0.0
    %2586 = vmatprep.subr.mxu0 0.0
    %2587 = vmatpush1.msra.mxu0 0.0
    %2588 = vmatprep.subr.mxu0 0.0
    %2589 = vmatpush1.msra.mxu0 0.0
    %2590 = vmatprep.subr.mxu0 0.0
    %2591 = vmatpush1.msra.mxu0 0.0
    %2592 = vmatprep.subr.mxu0 0.0
    %2593 = vmatpush1.msra.mxu0 0.0
    %2594 = vmatprep.subr.mxu0 0.0
    %2595 = vmatpush1.msra.mxu0 0.0
    %2596 = vmatprep.subr.mxu0 0.0
    %2597 = vmatpush1.msra.mxu0 0.0
    %2598 = vmatprep.subr.mxu0 0.0
    %2599 = vmatpush1.msra.mxu0 0.0
    %2600 = vmatprep.subr.mxu0 0.0
    %2601 = vmatpush1.msra.mxu0 0.0
    %2602 = vmatprep.subr.mxu0 0.0
    %2603 = vmatpush1.msra.mxu0 0.0
    %2604 = vmatprep.subr.mxu0 0.0
    %2605 = vmatpush1.msra.mxu0 0.0
    %2606 = vmatprep.subr.mxu0 0.0
    %2607 = vmatpush1.msra.mxu0 0.0
    %2608 = vmatprep.subr.mxu0 0.0
    %2609 = vmatpush1.msra.mxu0 0.0
    %2610 = vmatprep.subr.mxu0 0.0
    %2611 = vmatpush1.msra.mxu0 0.0
    %2612 = vmatprep.subr.mxu0 0.0
    %2613 = vmatpush1.msra.mxu0 0.0
    %2614 = vmatprep.subr.mxu0 0.0
    %2615 = vmatpush1.msra.mxu0 0.0
    %2616 = vmatprep.subr.mxu0 0.0
    %2617 = vmatpush1.msra.mxu0 0.0
    %2618 = vmatprep.subr.mxu0 0.0
    %2619 = vmatpush1.msra.mxu0 0.0
    %2620 = vmatprep.subr.mxu0 0.0
    %2621 = vmatpush1.msra.mxu0 0.0
    %2622 = vmatprep.subr.mxu0 0.0
    %2623 = vmatpush1.msra.mxu0 0.0
    %2624 = vmatprep.subr.mxu0 0.0
    %2625 = vmatpush1.msra.mxu0 0.0
    %2626 = vmatprep.subr.mxu0 0.0
    %2627 = vmatpush1.msra.mxu0 0.0
    %2628 = vmatprep.subr.mxu0 0.0
    %2629 = vmatpush1.msra.mxu0 0.0
    %2630 = vmatprep.subr.mxu0 0.0
    %2631 = vmatpush1.msra.mxu0 0.0
    %2632 = vmatprep.subr.mxu0 0.0
    %2633 = vmatpush1.msra.mxu0 0.0
    %2634 = vmatprep.mubr.f32.mxu0 0.0
    %2635 = vmatmul.mubr.f32.gmra.mrb[0].mxu0 %v60
    %v2636 = vpop.f32.mrb[0].mxu0
    %v2637 = vadd.f32 %v33, %v2636
    %v2638 = vpop.f32.mrb[0].mxu0
    %2639 = vmatprep.mubr.f32.mxu0 0.0
    %2640 = vmatmul.mubr.f32.gmra.mrb[0].mxu0 %v63
    %v2641 = vpop.f32.mrb[0].mxu0
    %v2642 = vadd.f32 %v38, %v2641
    %v2643 = vpop.f32.mrb[0].mxu0
    %2644 = vmatprep.mubr.f32.mxu0 0.0
    %2645 = vmatmul.mubr.f32.gmra.mrb[0].mxu0 %v66
    %v2646 = vpop.f32.mrb[0].mxu0
    %v2647 = vadd.f32 %v43, %v2646
    %v2648 = vpop.f32.mrb[0].mxu0
    %2649 = vmatprep.mubr.f32.mxu0 0.0
    %2650 = vmatmul.mubr.f32.gmra.mrb[0].mxu0 %v69
    %v2651 = vpop.f32.mrb[0].mxu0
    %v2652 = vadd.f32 %v48, %v2651
    %v2653 = vpop.f32.mrb[0].mxu0
    %2654 = vdwg.mxu0
    %v2655 = vtanh.pop %v2637
    %v2656 = vtanh.pop %v2642
    %v2657 = vtanh.pop %v2647
    %v2658 = vtanh.pop %v2652
    %2659 = vmatprep.subr.mxu0 0.0
    %2660 = vmatpush1.msra.mxu0 %v2655
    %2661 = vmatprep.subr.mxu0 0.0
    %2662 = vmatpush1.msra.mxu0 %v2656
    %2663 = vmatprep.subr.mxu0 0.0
    %2664 = vmatpush1.msra.mxu0 %v2657
    %2665 = vmatprep.subr.mxu0 0.0
    %2666 = vmatpush1.msra.mxu0 %v2658
    %2667 = vmatprep.subr.mxu0 0.0
    %2668 = vmatpush1.msra.mxu0 0.0
    %2669 = vmatprep.subr.mxu0 0.0
    %2670 = vmatpush1.msra.mxu0 0.0
    %2671 = vmatprep.subr.mxu0 0.0
    %2672 = vmatpush1.msra.mxu0 0.0
    %2673 = vmatprep.subr.mxu0 0.0
    %2674 = vmatpush1.msra.mxu0 0.0
    %2675 = vmatprep.subr.mxu0 0.0
    %2676 = vmatpush1.msra.mxu0 0.0
    %2677 = vmatprep.subr.mxu0 0.0
    %2678 = vmatpush1.msra.mxu0 0.0
    %2679 = vmatprep.subr.mxu0 0.0
    %2680 = vmatpush1.msra.mxu0 0.0
    %2681 = vmatprep.subr.mxu0 0.0
    %2682 = vmatpush1.msra.mxu0 0.0
    %2683 = vmatprep.subr.mxu0 0.0
    %2684 = vmatpush1.msra.mxu0 0.0
    %2685 = vmatprep.subr.mxu0 0.0
    %2686 = vmatpush1.msra.mxu0 0.0
    %2687 = vmatprep.subr.mxu0 0.0
    %2688 = vmatpush1.msra.mxu0 0.0
    %2689 = vmatprep.subr.mxu0 0.0
    %2690 = vmatpush1.msra.mxu0 0.0
    %2691 = vmatprep.subr.mxu0 0.0
    %2692 = vmatpush1.msra.mxu0 0.0
    %2693 = vmatprep.subr.mxu0 0.0
    %2694 = vmatpush1.msra.mxu0 0.0
    %2695 = vmatprep.subr.mxu0 0.0
    %2696 = vmatpush1.msra.mxu0 0.0
    %2697 = vmatprep.subr.mxu0 0.0
    %2698 = vmatpush1.msra.mxu0 0.0
    %2699 = vmatprep.subr.mxu0 0.0
    %2700 = vmatpush1.msra.mxu0 0.0
    %2701 = vmatprep.subr.mxu0 0.0
    %2702 = vmatpush1.msra.mxu0 0.0
    %2703 = vmatprep.subr.mxu0 0.0
    %2704 = vmatpush1.msra.mxu0 0.0
    %2705 = vmatprep.subr.mxu0 0.0
    %2706 = vmatpush1.msra.mxu0 0.0
    %2707 = vmatprep.subr.mxu0 0.0
    %2708 = vmatpush1.msra.mxu0 0.0
    %2709 = vmatprep.subr.mxu0 0.0
    %2710 = vmatpush1.msra.mxu0 0.0
    %2711 = vmatprep.subr.mxu0 0.0
    %2712 = vmatpush1.msra.mxu0 0.0
    %2713 = vmatprep.subr.mxu0 0.0
    %2714 = vmatpush1.msra.mxu0 0.0
    %2715 = vmatprep.subr.mxu0 0.0
    %2716 = vmatpush1.msra.mxu0 0.0
    %2717 = vmatprep.subr.mxu0 0.0
    %2718 = vmatpush1.msra.mxu0 0.0
    %2719 = vmatprep.subr.mxu0 0.0
    %2720 = vmatpush1.msra.mxu0 0.0
    %2721 = vmatprep.subr.mxu0 0.0
    %2722 = vmatpush1.msra.mxu0 0.0
    %2723 = vmatprep.mubr.f32.mxu0 0.0
    %2724 = vmatmul.mubr.f32.gmra.mrb[0].mxu0 %v166
    %v2725 = vpop.f32.mrb[0].mxu0
    %v2726 = vadd.f32 %v54, %v2725
    %v2727 = vpop.f32.mrb[0].mxu0
    %2728 = vdwg.mxu0
    %v2729 = vadd.f32 %v2394, %v2560
    %v2730 = vmul.f32 %v2729, 3.0
    %v2731 = vadd.f32 %v2230, %v2730
    %v2732 = vadd.f32 %v2731, %v2726
    %v2733 = vmul.f32 %v2732, 0.00125
    %v2734 = vadd.f32 %v2069, %v2733
    %2735 = vst [vmem:[#allocation2 + $0xc] sm:$0x7] %v2734
    // Predicated region
    $region22: #{tpu_custom_call.1} parent=1 // pred_check
      _
    $region23: #{tpu_custom_call.1} parent=1 // pred_check_branch
      %2737 = sbr.rel (0) target = $region25
    $region24: #{tpu_custom_call.1} parent=1 // pred_region
      %s2739 = ssub.s32 256, 256
      %2740 = vsyncadd [#allocation3], %s2739
      %s2741 = sshll.u32 [#allocation2], 4
      %s2742 = int_to_ptr.vmem [resolvable:$true] %s2741
      %2747 = dma.vmem_to_hbm [thread:$0]  %s2742, 256, %s5, [#allocation3], 128, 128, 8
    $region25: #{tpu_custom_call.1} parent=1 // pred_fallthru
      _
    // Predicated region
    $region26: #{tpu_custom_call.1} parent=1 // pred_check
      _
    $region27: #{tpu_custom_call.1} parent=1 // pred_check_branch
      %2749 = sbr.rel (0) target = $region29
    $region28: #{tpu_custom_call.1} parent=1 // pred_region
      %2750 = dma.done [#allocation3], 256
    $region29: #{tpu_custom_call.1} parent=1 // pred_fallthru
      _
    %2751 = vsyncpa [#allocation3], 1

</llo_original>
